<compile_context>
chip_gen: v5e
topology: v5e:2x2
jax: 0.10.0
libtpu: 0.0.40
codegen_flags: <defaults>
</compile_context>

<pallas_src>
import jax
import jax.numpy as jnp
from jax.experimental import pallas as pl
from jax.experimental.pallas import tpu as pltpu

LANE = 128
SUBLANE = 8


def _round_up(n, m):
    return (n + m - 1) // m * m


def _mlp_kernel(x_ref,
                w1_ref, b1_ref,
                w2_ref, b2_ref,
                w3_ref, b3_ref,
                w4_ref, b4_ref,
                o_ref):
    """Fused 4-layer MLP on one batch tile (weights stay resident in VMEM)."""
    x = x_ref[...]

    h = jnp.dot(x, w1_ref[...], preferred_element_type=jnp.float32) + b1_ref[...]
    h = jnp.maximum(h, 0.0)

    h = jnp.dot(h, w2_ref[...], preferred_element_type=jnp.float32) + b2_ref[...]
    h = jnp.maximum(h, 0.0)

    h = jnp.dot(h, w3_ref[...], preferred_element_type=jnp.float32) + b3_ref[...]
    h = jnp.maximum(h, 0.0)

    out = jnp.dot(h, w4_ref[...], preferred_element_type=jnp.float32) + b4_ref[...]
    o_ref[...] = out.astype(o_ref.dtype)


def _pad2d(a, rows, cols):
    r, c = a.shape
    return jnp.pad(a, ((0, rows - r), (0, cols - c)))


def ml_class_forward(x, params, *, batch_tile=None):
    """M_class forward with a fused Pallas kernel.

    x: (B, latent_dim) float32
    params: dict with w1..w4 (in_features, out_features) and b1..b4 (1, out).

    Feature dims are zero-padded to multiples of 128 inside the wrapper; this is
    mathematically a no-op (zero weight columns -> ReLU(0)=0 -> zero weight rows
    downstream) but keeps every vector op and the output store lane-dense.
    """
    B, latent_dim = x.shape
    target_dim = params["w4"].shape[1]

    # Lane-pad the layer widths (600/200/100/target -> 640/256/128/128 by default).
    h1 = _round_up(params["w1"].shape[1], LANE)
    h2 = _round_up(params["w2"].shape[1], LANE)
    h3 = _round_up(params["w3"].shape[1], LANE)
    ho = _round_up(target_dim, LANE)

    w1 = _pad2d(params["w1"], latent_dim, h1); b1 = _pad2d(params["b1"], 1, h1)
    w2 = _pad2d(params["w2"], h1, h2);         b2 = _pad2d(params["b2"], 1, h2)
    w3 = _pad2d(params["w3"], h2, h3);         b3 = _pad2d(params["b3"], 1, h3)
    w4 = _pad2d(params["w4"], h3, ho);         b4 = _pad2d(params["b4"], 1, ho)

    # Batch tiling: 256 rows fills the 2x256x256 MXU on v6e/v7x and is a full
    # multi-pass on v5e's 128-wide MXU. Small batches collapse to one step;
    # large batches (>=512) give >=2 parallel steps (both v7x TensorCores).
    if batch_tile is None:
        batch_tile = min(256, _round_up(B, SUBLANE))
    batch_tile = _round_up(batch_tile, SUBLANE)
    pb = _round_up(B, batch_tile)
    if pb != B:
        x = jnp.pad(x, ((0, pb - B), (0, 0)))

    grid = (pb // batch_tile,)

    # Advisory cost estimate for XLA scheduling around the custom call.
    flops = 2 * pb * (latent_dim * h1 + h1 * h2 + h2 * h3 + h3 * ho)
    bytes_accessed = 4 * (pb * latent_dim
                          + latent_dim * h1 + h1 * h2 + h2 * h3 + h3 * ho
                          + h1 + h2 + h3 + ho
                          + pb * ho)

    def make_call(single_buffer_weights):
        def resident(arr):
            # Grid-invariant block (whole array). Single-buffer it: the index_map
            # is constant, so no re-fetch across grid steps is ever needed.
            if single_buffer_weights:
                return pl.BlockSpec(arr.shape, lambda i: (0, 0),
                                    pipeline_mode=pl.Buffered(1))
            return pl.BlockSpec(arr.shape, lambda i: (0, 0))

        return pl.pallas_call(
            _mlp_kernel,
            out_shape=jax.ShapeDtypeStruct((pb, ho), jnp.float32),
            grid_spec=pltpu.PrefetchScalarGridSpec(
                num_scalar_prefetch=0,
                grid=grid,
                in_specs=[
                    pl.BlockSpec((batch_tile, latent_dim), lambda i: (i, 0)),
                    resident(w1), resident(b1),
                    resident(w2), resident(b2),
                    resident(w3), resident(b3),
                    resident(w4), resident(b4),
                ],
                out_specs=pl.BlockSpec((batch_tile, ho), lambda i: (i, 0)),
            ),
            compiler_params=pltpu.CompilerParams(
                dimension_semantics=("parallel",)),
            cost_estimate=pl.CostEstimate(
                flops=flops, transcendentals=0, bytes_accessed=bytes_accessed),
        )

    args = (x, w1, b1, w2, b2, w3, b3, w4, b4)
    try:
        out = make_call(True)(*args)
    except Exception:
        # Fallback if this jax build rejects Buffered(1) on pallas_call specs;
        # default double-buffering of the tiny weight blocks is still correct.
        out = make_call(False)(*args)

    return out[:B, :target_dim]


def init_params(key, latent_dim, target_dim):
    """nn.Linear-style init: U(-1/sqrt(fan_in), 1/sqrt(fan_in)).
    Weights stored as (in_features, out_features) — i.e. PyTorch weight.T."""
    dims = [(latent_dim, 600), (600, 200), (200, 100), (100, target_dim)]
    params = {}
    for idx, (fan_in, fan_out) in enumerate(dims, start=1):
        key, kw, kb = jax.random.split(key, 3)
        bound = 1.0 / jnp.sqrt(float(fan_in))
        params[f"w{idx}"] = jax.random.uniform(
            kw, (fan_in, fan_out), jnp.float32, -bound, bound)
        params[f"b{idx}"] = jax.random.uniform(
            kb, (1, fan_out), jnp.float32, -bound, bound)
    return params


def _reference_forward(x, params):
    h = x
    for idx in range(1, 4):
        h = jnp.maximum(h @ params[f"w{idx}"] + params[f"b{idx}"], 0.0)
    return h @ params["w4"] + params["b4"]


if __name__ == "__main__":
    latent_dim = 32
    target_dim = 10
    batch = 2

    key = jax.random.PRNGKey(0)
    kx, kp = jax.random.split(key)
    x = jax.random.normal(kx, (batch, latent_dim), jnp.float32)
    params = init_params(kp, latent_dim, target_dim)

    out = ml_class_forward(x, params)
    out = jax.block_until_ready(out)

    ref = _reference_forward(x, params)
    assert out.shape == (batch, target_dim), out.shape
    assert jnp.allclose(out, ref, atol=1e-4, rtol=1e-4), "mismatch vs reference"

    # Also exercise a batch that spans multiple grid steps.
    xb = jax.random.normal(kx, (300, latent_dim), jnp.float32)
    outb = jax.block_until_ready(ml_class_forward(xb, params, batch_tile=128))
    assert jnp.allclose(outb, _reference_forward(xb, params), atol=1e-4, rtol=1e-4)

    print("KERNEL_OK")
</pallas_src>

<mosaic_0001>
module attributes {stable_mosaic.version = 11 : i64} {
  func.func @_mlp_kernel(%arg0: i32, %arg1: memref<8x32xf32, #tpu.memory_space<vmem>>, %arg2: memref<32x640xf32, #tpu.memory_space<vmem>>, %arg3: memref<1x640xf32, #tpu.memory_space<vmem>>, %arg4: memref<640x256xf32, #tpu.memory_space<vmem>>, %arg5: memref<1x256xf32, #tpu.memory_space<vmem>>, %arg6: memref<256x128xf32, #tpu.memory_space<vmem>>, %arg7: memref<1x128xf32, #tpu.memory_space<vmem>>, %arg8: memref<128x128xf32, #tpu.memory_space<vmem>>, %arg9: memref<1x128xf32, #tpu.memory_space<vmem>>, %arg10: memref<8x128xf32, #tpu.memory_space<vmem>>) attributes {dimension_semantics = [#tpu.dimension_semantics<parallel>], iteration_bounds = array<i64: 1>, scalar_prefetch = 0 : i64, scratch_operands = 0 : i64, tpu.core_type = #tpu.core_type<tc>, window_params = [{transform_indices = @transform_0, window_bounds = array<i64: 8, 32>}, {pipeline_mode = #tpu.pipeline_mode<synchronous>, transform_indices = @transform_1, window_bounds = array<i64: 32, 640>}, {pipeline_mode = #tpu.pipeline_mode<synchronous>, transform_indices = @transform_2, window_bounds = array<i64: 1, 640>}, {pipeline_mode = #tpu.pipeline_mode<synchronous>, transform_indices = @transform_3, window_bounds = array<i64: 640, 256>}, {pipeline_mode = #tpu.pipeline_mode<synchronous>, transform_indices = @transform_4, window_bounds = array<i64: 1, 256>}, {pipeline_mode = #tpu.pipeline_mode<synchronous>, transform_indices = @transform_5, window_bounds = array<i64: 256, 128>}, {pipeline_mode = #tpu.pipeline_mode<synchronous>, transform_indices = @transform_6, window_bounds = array<i64: 1, 128>}, {pipeline_mode = #tpu.pipeline_mode<synchronous>, transform_indices = @transform_7, window_bounds = array<i64: 128, 128>}, {pipeline_mode = #tpu.pipeline_mode<synchronous>, transform_indices = @transform_8, window_bounds = array<i64: 1, 128>}, {transform_indices = @transform_9, window_bounds = array<i64: 8, 128>}]} {
    %c0 = arith.constant 0 : index
    %c0_0 = arith.constant 0 : index
    %0 = vector.load %arg1[%c0, %c0_0] : memref<8x32xf32, #tpu.memory_space<vmem>>, vector<8x32xf32>
    %c0_1 = arith.constant 0 : index
    %c0_2 = arith.constant 0 : index
    %1 = vector.load %arg2[%c0_1, %c0_2] : memref<32x640xf32, #tpu.memory_space<vmem>>, vector<32x640xf32>
    %cst = arith.constant dense<0.000000e+00> : vector<8x640xf32>
    %2 = tpu.matmul %0, %1, %cst {dimension_numbers = #tpu.dot_dimension_numbers<[1], [0], [0], [1], [0, 0, 1, 1], [], []>} : vector<8x32xf32>, vector<32x640xf32>, vector<8x640xf32> -> vector<8x640xf32>
    %c0_3 = arith.constant 0 : index
    %c0_4 = arith.constant 0 : index
    %3 = vector.load %arg3[%c0_3, %c0_4] : memref<1x640xf32, #tpu.memory_space<vmem>>, vector<1x640xf32>
    %4 = vector.broadcast %3 : vector<1x640xf32> to vector<8x640xf32>
    %5 = arith.addf %2, %4 : vector<8x640xf32>
    %cst_5 = arith.constant 0.000000e+00 : f32
    %6 = vector.broadcast %cst_5 : f32 to vector<8x640xf32>
    %7 = arith.maximumf %5, %6 : vector<8x640xf32>
    %c0_6 = arith.constant 0 : index
    %c0_7 = arith.constant 0 : index
    %8 = vector.load %arg4[%c0_6, %c0_7] : memref<640x256xf32, #tpu.memory_space<vmem>>, vector<640x256xf32>
    %cst_8 = arith.constant dense<0.000000e+00> : vector<8x256xf32>
    %9 = tpu.matmul %7, %8, %cst_8 {dimension_numbers = #tpu.dot_dimension_numbers<[1], [0], [0], [1], [0, 0, 1, 1], [], []>} : vector<8x640xf32>, vector<640x256xf32>, vector<8x256xf32> -> vector<8x256xf32>
    %c0_9 = arith.constant 0 : index
    %c0_10 = arith.constant 0 : index
    %10 = vector.load %arg5[%c0_9, %c0_10] : memref<1x256xf32, #tpu.memory_space<vmem>>, vector<1x256xf32>
    %11 = vector.broadcast %10 : vector<1x256xf32> to vector<8x256xf32>
    %12 = arith.addf %9, %11 : vector<8x256xf32>
    %cst_11 = arith.constant 0.000000e+00 : f32
    %13 = vector.broadcast %cst_11 : f32 to vector<8x256xf32>
    %14 = arith.maximumf %12, %13 : vector<8x256xf32>
    %c0_12 = arith.constant 0 : index
    %c0_13 = arith.constant 0 : index
    %15 = vector.load %arg6[%c0_12, %c0_13] : memref<256x128xf32, #tpu.memory_space<vmem>>, vector<256x128xf32>
    %cst_14 = arith.constant dense<0.000000e+00> : vector<8x128xf32>
    %16 = tpu.matmul %14, %15, %cst_14 {dimension_numbers = #tpu.dot_dimension_numbers<[1], [0], [0], [1], [0, 0, 1, 1], [], []>} : vector<8x256xf32>, vector<256x128xf32>, vector<8x128xf32> -> vector<8x128xf32>
    %c0_15 = arith.constant 0 : index
    %c0_16 = arith.constant 0 : index
    %17 = vector.load %arg7[%c0_15, %c0_16] : memref<1x128xf32, #tpu.memory_space<vmem>>, vector<1x128xf32>
    %18 = vector.broadcast %17 : vector<1x128xf32> to vector<8x128xf32>
    %19 = arith.addf %16, %18 : vector<8x128xf32>
    %cst_17 = arith.constant 0.000000e+00 : f32
    %20 = vector.broadcast %cst_17 : f32 to vector<8x128xf32>
    %21 = arith.maximumf %19, %20 : vector<8x128xf32>
    %c0_18 = arith.constant 0 : index
    %c0_19 = arith.constant 0 : index
    %22 = vector.load %arg8[%c0_18, %c0_19] : memref<128x128xf32, #tpu.memory_space<vmem>>, vector<128x128xf32>
    %cst_20 = arith.constant dense<0.000000e+00> : vector<8x128xf32>
    %23 = tpu.matmul %21, %22, %cst_20 {dimension_numbers = #tpu.dot_dimension_numbers<[1], [0], [0], [1], [0, 0, 1, 1], [], []>} : vector<8x128xf32>, vector<128x128xf32>, vector<8x128xf32> -> vector<8x128xf32>
    %c0_21 = arith.constant 0 : index
    %c0_22 = arith.constant 0 : index
    %24 = vector.load %arg9[%c0_21, %c0_22] : memref<1x128xf32, #tpu.memory_space<vmem>>, vector<1x128xf32>
    %25 = vector.broadcast %24 : vector<1x128xf32> to vector<8x128xf32>
    %26 = arith.addf %23, %25 : vector<8x128xf32>
    %c0_23 = arith.constant 0 : index
    %c0_24 = arith.constant 0 : index
    %27 = vector.load %arg10[%c0_23, %c0_24] : memref<8x128xf32, #tpu.memory_space<vmem>>, vector<8x128xf32>
    tpu.vector_store %arg10[%c0_23, %c0_24], %26 {strides = array<i32>} : memref<8x128xf32, #tpu.memory_space<vmem>>, vector<8x128xf32>,
    return
  }
  func.func @transform_0(%arg0: i32) -> (i32, i32) {
    %c0_i32 = arith.constant 0 : i32
    %c0_i32_0 = arith.constant 0 : i32
    return %arg0, %c0_i32 : i32, i32
  }
  func.func @transform_1(%arg0: i32) -> (i32, i32) {
    %c0_i32 = arith.constant 0 : i32
    %c0_i32_0 = arith.constant 0 : i32
    %c0_i32_1 = arith.constant 0 : i32
    return %c0_i32, %c0_i32_0 : i32, i32
  }
  func.func @transform_2(%arg0: i32) -> (i32, i32) {
    %c0_i32 = arith.constant 0 : i32
    %c0_i32_0 = arith.constant 0 : i32
    %c0_i32_1 = arith.constant 0 : i32
    return %c0_i32, %c0_i32_0 : i32, i32
  }
  func.func @transform_3(%arg0: i32) -> (i32, i32) {
    %c0_i32 = arith.constant 0 : i32
    %c0_i32_0 = arith.constant 0 : i32
    %c0_i32_1 = arith.constant 0 : i32
    return %c0_i32, %c0_i32_0 : i32, i32
  }
  func.func @transform_4(%arg0: i32) -> (i32, i32) {
    %c0_i32 = arith.constant 0 : i32
    %c0_i32_0 = arith.constant 0 : i32
    %c0_i32_1 = arith.constant 0 : i32
    return %c0_i32, %c0_i32_0 : i32, i32
  }
  func.func @transform_5(%arg0: i32) -> (i32, i32) {
    %c0_i32 = arith.constant 0 : i32
    %c0_i32_0 = arith.constant 0 : i32
    %c0_i32_1 = arith.constant 0 : i32
    return %c0_i32, %c0_i32_0 : i32, i32
  }
  func.func @transform_6(%arg0: i32) -> (i32, i32) {
    %c0_i32 = arith.constant 0 : i32
    %c0_i32_0 = arith.constant 0 : i32
    %c0_i32_1 = arith.constant 0 : i32
    return %c0_i32, %c0_i32_0 : i32, i32
  }
  func.func @transform_7(%arg0: i32) -> (i32, i32) {
    %c0_i32 = arith.constant 0 : i32
    %c0_i32_0 = arith.constant 0 : i32
    %c0_i32_1 = arith.constant 0 : i32
    return %c0_i32, %c0_i32_0 : i32, i32
  }
  func.func @transform_8(%arg0: i32) -> (i32, i32) {
    %c0_i32 = arith.constant 0 : i32
    %c0_i32_0 = arith.constant 0 : i32
    %c0_i32_1 = arith.constant 0 : i32
    return %c0_i32, %c0_i32_0 : i32, i32
  }
  func.func @transform_9(%arg0: i32) -> (i32, i32) {
    %c0_i32 = arith.constant 0 : i32
    %c0_i32_0 = arith.constant 0 : i32
    return %arg0, %c0_i32 : i32, i32
  }
}

module attributes {stable_mosaic.version = 11 : i64} {
  func.func @_mlp_kernel(%arg0: i32, %arg1: memref<8x32xf32, #tpu.memory_space<vmem>>, %arg2: memref<32x640xf32, #tpu.memory_space<vmem>>, %arg3: memref<1x640xf32, #tpu.memory_space<vmem>>, %arg4: memref<640x256xf32, #tpu.memory_space<vmem>>, %arg5: memref<1x256xf32, #tpu.memory_space<vmem>>, %arg6: memref<256x128xf32, #tpu.memory_space<vmem>>, %arg7: memref<1x128xf32, #tpu.memory_space<vmem>>, %arg8: memref<128x128xf32, #tpu.memory_space<vmem>>, %arg9: memref<1x128xf32, #tpu.memory_space<vmem>>, %arg10: memref<8x128xf32, #tpu.memory_space<vmem>>) attributes {dimension_semantics = [#tpu.dimension_semantics<parallel>], iteration_bounds = array<i64: 1>, scalar_prefetch = 0 : i64, scratch_operands = 0 : i64, tpu.core_type = #tpu.core_type<tc>, window_params = [{transform_indices = @transform_0, window_bounds = array<i64: 8, 32>}, {pipeline_mode = #tpu.pipeline_mode<synchronous>, transform_indices = @transform_1, window_bounds = array<i64: 32, 640>}, {pipeline_mode = #tpu.pipeline_mode<synchronous>, transform_indices = @transform_2, window_bounds = array<i64: 1, 640>}, {pipeline_mode = #tpu.pipeline_mode<synchronous>, transform_indices = @transform_3, window_bounds = array<i64: 640, 256>}, {pipeline_mode = #tpu.pipeline_mode<synchronous>, transform_indices = @transform_4, window_bounds = array<i64: 1, 256>}, {pipeline_mode = #tpu.pipeline_mode<synchronous>, transform_indices = @transform_5, window_bounds = array<i64: 256, 128>}, {pipeline_mode = #tpu.pipeline_mode<synchronous>, transform_indices = @transform_6, window_bounds = array<i64: 1, 128>}, {pipeline_mode = #tpu.pipeline_mode<synchronous>, transform_indices = @transform_7, window_bounds = array<i64: 128, 128>}, {pipeline_mode = #tpu.pipeline_mode<synchronous>, transform_indices = @transform_8, window_bounds = array<i64: 1, 128>}, {transform_indices = @transform_9, window_bounds = array<i64: 8, 128>}]} {
    %c0 = arith.constant 0 : index
    %c0_0 = arith.constant 0 : index
    %0 = vector.load %arg1[%c0, %c0_0] : memref<8x32xf32, #tpu.memory_space<vmem>>, vector<8x32xf32>
    %c0_1 = arith.constant 0 : index
    %c0_2 = arith.constant 0 : index
    %1 = vector.load %arg2[%c0_1, %c0_2] : memref<32x640xf32, #tpu.memory_space<vmem>>, vector<32x640xf32>
    %cst = arith.constant dense<0.000000e+00> : vector<8x640xf32>
    %2 = tpu.matmul %0, %1, %cst {dimension_numbers = #tpu.dot_dimension_numbers<[1], [0], [0], [1], [0, 0, 1, 1], [], []>} : vector<8x32xf32>, vector<32x640xf32>, vector<8x640xf32> -> vector<8x640xf32>
    %c0_3 = arith.constant 0 : index
    %c0_4 = arith.constant 0 : index
    %3 = vector.load %arg3[%c0_3, %c0_4] : memref<1x640xf32, #tpu.memory_space<vmem>>, vector<1x640xf32>
    %4 = vector.broadcast %3 : vector<1x640xf32> to vector<8x640xf32>
    %5 = arith.addf %2, %4 : vector<8x640xf32>
    %cst_5 = arith.constant 0.000000e+00 : f32
    %6 = vector.broadcast %cst_5 : f32 to vector<8x640xf32>
    %7 = arith.maximumf %5, %6 : vector<8x640xf32>
    %c0_6 = arith.constant 0 : index
    %c0_7 = arith.constant 0 : index
    %8 = vector.load %arg4[%c0_6, %c0_7] : memref<640x256xf32, #tpu.memory_space<vmem>>, vector<640x256xf32>
    %cst_8 = arith.constant dense<0.000000e+00> : vector<8x256xf32>
    %9 = tpu.matmul %7, %8, %cst_8 {dimension_numbers = #tpu.dot_dimension_numbers<[1], [0], [0], [1], [0, 0, 1, 1], [], []>} : vector<8x640xf32>, vector<640x256xf32>, vector<8x256xf32> -> vector<8x256xf32>
    %c0_9 = arith.constant 0 : index
    %c0_10 = arith.constant 0 : index
    %10 = vector.load %arg5[%c0_9, %c0_10] : memref<1x256xf32, #tpu.memory_space<vmem>>, vector<1x256xf32>
    %11 = vector.broadcast %10 : vector<1x256xf32> to vector<8x256xf32>
    %12 = arith.addf %9, %11 : vector<8x256xf32>
    %cst_11 = arith.constant 0.000000e+00 : f32
    %13 = vector.broadcast %cst_11 : f32 to vector<8x256xf32>
    %14 = arith.maximumf %12, %13 : vector<8x256xf32>
    %c0_12 = arith.constant 0 : index
    %c0_13 = arith.constant 0 : index
    %15 = vector.load %arg6[%c0_12, %c0_13] : memref<256x128xf32, #tpu.memory_space<vmem>>, vector<256x128xf32>
    %cst_14 = arith.constant dense<0.000000e+00> : vector<8x128xf32>
    %16 = tpu.matmul %14, %15, %cst_14 {dimension_numbers = #tpu.dot_dimension_numbers<[1], [0], [0], [1], [0, 0, 1, 1], [], []>} : vector<8x256xf32>, vector<256x128xf32>, vector<8x128xf32> -> vector<8x128xf32>
    %c0_15 = arith.constant 0 : index
    %c0_16 = arith.constant 0 : index
    %17 = vector.load %arg7[%c0_15, %c0_16] : memref<1x128xf32, #tpu.memory_space<vmem>>, vector<1x128xf32>
    %18 = vector.broadcast %17 : vector<1x128xf32> to vector<8x128xf32>
    %19 = arith.addf %16, %18 : vector<8x128xf32>
    %cst_17 = arith.constant 0.000000e+00 : f32
    %20 = vector.broadcast %cst_17 : f32 to vector<8x128xf32>
    %21 = arith.maximumf %19, %20 : vector<8x128xf32>
    %c0_18 = arith.constant 0 : index
    %c0_19 = arith.constant 0 : index
    %22 = vector.load %arg8[%c0_18, %c0_19] : memref<128x128xf32, #tpu.memory_space<vmem>>, vector<128x128xf32>
    %cst_20 = arith.constant dense<0.000000e+00> : vector<8x128xf32>
    %23 = tpu.matmul %21, %22, %cst_20 {dimension_numbers = #tpu.dot_dimension_numbers<[1], [0], [0], [1], [0, 0, 1, 1], [], []>} : vector<8x128xf32>, vector<128x128xf32>, vector<8x128xf32> -> vector<8x128xf32>
    %c0_21 = arith.constant 0 : index
    %c0_22 = arith.constant 0 : index
    %24 = vector.load %arg9[%c0_21, %c0_22] : memref<1x128xf32, #tpu.memory_space<vmem>>, vector<1x128xf32>
    %25 = vector.broadcast %24 : vector<1x128xf32> to vector<8x128xf32>
    %26 = arith.addf %23, %25 : vector<8x128xf32>
    %c0_23 = arith.constant 0 : index
    %c0_24 = arith.constant 0 : index
    %27 = vector.load %arg10[%c0_23, %c0_24] : memref<8x128xf32, #tpu.memory_space<vmem>>, vector<8x128xf32>
    tpu.vector_store %arg10[%c0_23, %c0_24], %26 {strides = array<i32>} : memref<8x128xf32, #tpu.memory_space<vmem>>, vector<8x128xf32>,
    return
  }
  func.func @transform_0(%arg0: i32) -> (i32, i32) {
    %c0_i32 = arith.constant 0 : i32
    %c0_i32_0 = arith.constant 0 : i32
    return %arg0, %c0_i32 : i32, i32
  }
  func.func @transform_1(%arg0: i32) -> (i32, i32) {
    %c0_i32 = arith.constant 0 : i32
    %c0_i32_0 = arith.constant 0 : i32
    %c0_i32_1 = arith.constant 0 : i32
    return %c0_i32, %c0_i32_0 : i32, i32
  }
  func.func @transform_2(%arg0: i32) -> (i32, i32) {
    %c0_i32 = arith.constant 0 : i32
    %c0_i32_0 = arith.constant 0 : i32
    %c0_i32_1 = arith.constant 0 : i32
    return %c0_i32, %c0_i32_0 : i32, i32
  }
  func.func @transform_3(%arg0: i32) -> (i32, i32) {
    %c0_i32 = arith.constant 0 : i32
    %c0_i32_0 = arith.constant 0 : i32
    %c0_i32_1 = arith.constant 0 : i32
    return %c0_i32, %c0_i32_0 : i32, i32
  }
  func.func @transform_4(%arg0: i32) -> (i32, i32) {
    %c0_i32 = arith.constant 0 : i32
    %c0_i32_0 = arith.constant 0 : i32
    %c0_i32_1 = arith.constant 0 : i32
    return %c0_i32, %c0_i32_0 : i32, i32
  }
  func.func @transform_5(%arg0: i32) -> (i32, i32) {
    %c0_i32 = arith.constant 0 : i32
    %c0_i32_0 = arith.constant 0 : i32
    %c0_i32_1 = arith.constant 0 : i32
    return %c0_i32, %c0_i32_0 : i32, i32
  }
  func.func @transform_6(%arg0: i32) -> (i32, i32) {
    %c0_i32 = arith.constant 0 : i32
    %c0_i32_0 = arith.constant 0 : i32
    %c0_i32_1 = arith.constant 0 : i32
    return %c0_i32, %c0_i32_0 : i32, i32
  }
  func.func @transform_7(%arg0: i32) -> (i32, i32) {
    %c0_i32 = arith.constant 0 : i32
    %c0_i32_0 = arith.constant 0 : i32
    %c0_i32_1 = arith.constant 0 : i32
    return %c0_i32, %c0_i32_0 : i32, i32
  }
  func.func @transform_8(%arg0: i32) -> (i32, i32) {
    %c0_i32 = arith.constant 0 : i32
    %c0_i32_0 = arith.constant 0 : i32
    %c0_i32_1 = arith.constant 0 : i32
    return %c0_i32, %c0_i32_0 : i32, i32
  }
  func.func @transform_9(%arg0: i32) -> (i32, i32) {
    %c0_i32 = arith.constant 0 : i32
    %c0_i32_0 = arith.constant 0 : i32
    return %arg0, %c0_i32 : i32, i32
  }
}

</mosaic_0001>

<llo_original>
// kernel: tpu_custom_call.1
$region0: #{tpu_custom_call.1}
  #allocation0 [shape = 'u32[]', space=smem, size = 0x4, offset = 0x4, fixed_abs, tag = 'smem constant byte address 0x4 - core index']
  #allocation1 [shape = 'u32[72,128]{1,0:T(1,128)}', space=vmem, size = 0x9000, scoped, tag = 'internal scratch']
  %s0 = inlined_call_operand.hbm [shape: f32[8,32], index: 0, kind: input, shape index: {}]
  %s1 = inlined_call_operand.hbm [shape: f32[32,640], index: 1, kind: input, shape index: {}]
  %s2 = inlined_call_operand.hbm [shape: f32[1,640], index: 2, kind: input, shape index: {}]
  %s3 = inlined_call_operand.hbm [shape: f32[640,256], index: 3, kind: input, shape index: {}]
  %s4 = inlined_call_operand.vmem [shape: f32[1,256], index: 4, kind: input, shape index: {}]
  %s5 = inlined_call_operand.hbm [shape: f32[256,128], index: 5, kind: input, shape index: {}]
  %s6 = inlined_call_operand.vmem [shape: f32[1,128], index: 6, kind: input, shape index: {}]
  %s7 = inlined_call_operand.hbm [shape: f32[128,128], index: 7, kind: input, shape index: {}]
  %s8 = inlined_call_operand.vmem [shape: f32[1,128], index: 8, kind: input, shape index: {}]
  %s9 = inlined_call_operand.hbm [shape: f32[8,128], index: 9, kind: output, shape index: {}]
  %s10 = sld [smem:[#allocation0]]
  $region70: #{tpu_custom_call.1} parent=0
    _
  %s12 = ssub.s32 1, %s10
  %s13 = scalar_select 0, %s12, %s10
  $region1: #{tpu_custom_call.1} parent=0
    #allocation2 [shape = 'u8[4096]{0}', space=vmem, size = 0x1000, scoped, tag = 'input window, operand 0, single buffered']
    #allocation3 [shape = 's32[1]{0}', space=sflag, size = 0x4, scoped, tag = 'scoped memory for tpu_custom_call.1']
    #allocation4 [shape = 's32[1]{0}', space=sflag, size = 0x4, scoped, tag = 'scoped memory for tpu_custom_call.1']
    #allocation5 [shape = 'u8[81920]{0}', space=vmem, size = 0x14000, scoped, tag = 'input window, operand 1, single buffered']
    #allocation6 [shape = 's32[1]{0}', space=sflag, size = 0x4, scoped, tag = 'scoped memory for tpu_custom_call.1']
    #allocation7 [shape = 'u8[2560]{0}', space=vmem, size = 0xc00, scoped, tag = 'input window, operand 2, single buffered']
    #allocation8 [shape = 'u8[655360]{0}', space=vmem, size = 0xa0000, scoped, tag = 'input window, operand 3, single buffered']
    #allocation9 [shape = 's32[1]{0}', space=sflag, size = 0x4, scoped, tag = 'scoped memory for tpu_custom_call.1']
    #allocation10 [shape = 'u8[131072]{0}', space=vmem, size = 0x20000, scoped, tag = 'input window, operand 5, single buffered']
    #allocation11 [shape = 'u8[65536]{0}', space=vmem, size = 0x10000, scoped, tag = 'input window, operand 7, single buffered']
    #allocation12 [shape = 's32[1]{0}', space=sflag, size = 0x4, scoped, tag = 'scoped memory for tpu_custom_call.1']
    #allocation13 [shape = 'u8[4096]{0}', space=vmem, size = 0x1000, scoped, tag = 'output window, operand 0, single buffered']
    %14 = vsyncpa [#allocation3], 0
    %15 = vsyncpa [#allocation6], 0
    %16 = vsyncpa [#allocation9], 0
    %17 = vsyncpa [#allocation12], 0
    %18 = vsyncpa [#allocation4], 0
    // Predicated region
    $region2: #{tpu_custom_call.1} parent=1 // pred_check
      _
    $region3: #{tpu_custom_call.1} parent=1 // pred_check_branch
      %20 = sbr.rel (0) target = $region5
    $region4: #{tpu_custom_call.1} parent=1 // pred_region
      %22 = vsyncadd [#allocation3], 0
      %s24 = sshll.u32 %s0, 4
      %s25 = int_to_ptr.hbm [resolvable:$true] %s24
      %s26 = sshll.u32 [#allocation2], 4
      %s27 = int_to_ptr.vmem [resolvable:$true] %s26
      %29 = dma.hbm_to_vmem [thread:$0]  %s25, 128, %s27, [#allocation3]
    $region5: #{tpu_custom_call.1} parent=1 // pred_fallthru
      _
    // Predicated region
    $region6: #{tpu_custom_call.1} parent=1 // pred_check
      _
    $region7: #{tpu_custom_call.1} parent=1 // pred_check_branch
      %31 = sbr.rel (0) target = $region9
    $region8: #{tpu_custom_call.1} parent=1 // pred_region
      %33 = vsyncadd [#allocation6], 0
      %s34 = sshll.u32 %s1, 4
      %s35 = int_to_ptr.hbm [resolvable:$true] %s34
      %s36 = sshll.u32 [#allocation5], 4
      %s37 = int_to_ptr.vmem [resolvable:$true] %s36
      %42 = dma.hbm_to_vmem [thread:$0]  %s35, 2560, %s37, [#allocation6], 640, 640, 40
    $region9: #{tpu_custom_call.1} parent=1 // pred_fallthru
      _
    // Predicated region
    $region10: #{tpu_custom_call.1} parent=1 // pred_check
      _
    $region11: #{tpu_custom_call.1} parent=1 // pred_check_branch
      %44 = sbr.rel (0) target = $region13
    $region12: #{tpu_custom_call.1} parent=1 // pred_region
      %46 = vsyncadd [#allocation6], 0
      %s48 = sshll.u32 %s2, 4
      %s49 = int_to_ptr.hbm [resolvable:$true] %s48
      %s50 = sshll.u32 [#allocation7], 4
      %s51 = int_to_ptr.vmem [resolvable:$true] %s50
      %53 = dma.hbm_to_vmem [thread:$0]  %s49, 80, %s51, [#allocation6]
    $region13: #{tpu_custom_call.1} parent=1 // pred_fallthru
      _
    // Predicated region
    $region14: #{tpu_custom_call.1} parent=1 // pred_check
      _
    $region15: #{tpu_custom_call.1} parent=1 // pred_check_branch
      %55 = sbr.rel (0) target = $region17
    $region16: #{tpu_custom_call.1} parent=1 // pred_region
      %57 = vsyncadd [#allocation9], 0
      %s58 = sshll.u32 %s3, 4
      %s59 = int_to_ptr.hbm [resolvable:$true] %s58
      %s60 = sshll.u32 [#allocation8], 4
      %s61 = int_to_ptr.vmem [resolvable:$true] %s60
      %66 = dma.hbm_to_vmem [thread:$0]  %s59, 20480, %s61, [#allocation9], 256, 256, 16
    $region17: #{tpu_custom_call.1} parent=1 // pred_fallthru
      _
    // Predicated region
    $region18: #{tpu_custom_call.1} parent=1 // pred_check
      _
    $region19: #{tpu_custom_call.1} parent=1 // pred_check_branch
      %68 = sbr.rel (0) target = $region21
    $region20: #{tpu_custom_call.1} parent=1 // pred_region
      _
    $region21: #{tpu_custom_call.1} parent=1 // pred_fallthru
      _
    // Predicated region
    $region22: #{tpu_custom_call.1} parent=1 // pred_check
      _
    $region23: #{tpu_custom_call.1} parent=1 // pred_check_branch
      %70 = sbr.rel (0) target = $region25
    $region24: #{tpu_custom_call.1} parent=1 // pred_region
      %72 = vsyncadd [#allocation9], 0
      %s73 = sshll.u32 %s5, 4
      %s74 = int_to_ptr.hbm [resolvable:$true] %s73
      %s75 = sshll.u32 [#allocation10], 4
      %s76 = int_to_ptr.vmem [resolvable:$true] %s75
      %81 = dma.hbm_to_vmem [thread:$0]  %s74, 4096, %s76, [#allocation9], 128, 128, 8
    $region25: #{tpu_custom_call.1} parent=1 // pred_fallthru
      _
    // Predicated region
    $region26: #{tpu_custom_call.1} parent=1 // pred_check
      _
    $region27: #{tpu_custom_call.1} parent=1 // pred_check_branch
      %83 = sbr.rel (0) target = $region29
    $region28: #{tpu_custom_call.1} parent=1 // pred_region
      _
    $region29: #{tpu_custom_call.1} parent=1 // pred_fallthru
      _
    // Predicated region
    $region30: #{tpu_custom_call.1} parent=1 // pred_check
      _
    $region31: #{tpu_custom_call.1} parent=1 // pred_check_branch
      %85 = sbr.rel (0) target = $region33
    $region32: #{tpu_custom_call.1} parent=1 // pred_region
      %87 = vsyncadd [#allocation12], 0
      %s88 = sshll.u32 %s7, 4
      %s89 = int_to_ptr.hbm [resolvable:$true] %s88
      %s90 = sshll.u32 [#allocation11], 4
      %s91 = int_to_ptr.vmem [resolvable:$true] %s90
      %96 = dma.hbm_to_vmem [thread:$0]  %s89, 2048, %s91, [#allocation12], 128, 128, 8
    $region33: #{tpu_custom_call.1} parent=1 // pred_fallthru
      _
    // Predicated region
    $region34: #{tpu_custom_call.1} parent=1 // pred_check
      _
    $region35: #{tpu_custom_call.1} parent=1 // pred_check_branch
      %98 = sbr.rel (0) target = $region37
    $region36: #{tpu_custom_call.1} parent=1 // pred_region
      _
    $region37: #{tpu_custom_call.1} parent=1 // pred_fallthru
      _
    // Predicated region
    $region38: #{tpu_custom_call.1} parent=1 // pred_check
      _
    $region39: #{tpu_custom_call.1} parent=1 // pred_check_branch
      %100 = sbr.rel (0) target = $region41
    $region40: #{tpu_custom_call.1} parent=1 // pred_region
      %102 = dma.done [#allocation3], 128
    $region41: #{tpu_custom_call.1} parent=1 // pred_fallthru
      _
    // Predicated region
    $region42: #{tpu_custom_call.1} parent=1 // pred_check
      _
    $region43: #{tpu_custom_call.1} parent=1 // pred_check_branch
      %104 = sbr.rel (0) target = $region45
    $region44: #{tpu_custom_call.1} parent=1 // pred_region
      %106 = dma.done [#allocation6], 2560
    $region45: #{tpu_custom_call.1} parent=1 // pred_fallthru
      _
    // Predicated region
    $region46: #{tpu_custom_call.1} parent=1 // pred_check
      _
    $region47: #{tpu_custom_call.1} parent=1 // pred_check_branch
      %108 = sbr.rel (0) target = $region49
    $region48: #{tpu_custom_call.1} parent=1 // pred_region
      %110 = dma.done [#allocation6], 80
    $region49: #{tpu_custom_call.1} parent=1 // pred_fallthru
      _
    // Predicated region
    $region50: #{tpu_custom_call.1} parent=1 // pred_check
      _
    $region51: #{tpu_custom_call.1} parent=1 // pred_check_branch
      %112 = sbr.rel (0) target = $region53
    $region52: #{tpu_custom_call.1} parent=1 // pred_region
      %114 = dma.done [#allocation9], 20480
    $region53: #{tpu_custom_call.1} parent=1 // pred_fallthru
      _
    // Predicated region
    $region54: #{tpu_custom_call.1} parent=1 // pred_check
      _
    $region55: #{tpu_custom_call.1} parent=1 // pred_check_branch
      %116 = sbr.rel (0) target = $region57
    $region56: #{tpu_custom_call.1} parent=1 // pred_region
      %118 = dma.done [#allocation9], 4096
    $region57: #{tpu_custom_call.1} parent=1 // pred_fallthru
      _
    // Predicated region
    $region58: #{tpu_custom_call.1} parent=1 // pred_check
      _
    $region59: #{tpu_custom_call.1} parent=1 // pred_check_branch
      %120 = sbr.rel (0) target = $region61
    $region60: #{tpu_custom_call.1} parent=1 // pred_region
      %122 = dma.done [#allocation12], 2048
    $region61: #{tpu_custom_call.1} parent=1 // pred_fallthru
      _
    %v123 = vld [vmem:[#allocation2] sm:$0xff]
    %v124 = vld [vmem:[#allocation5] sm:$0xff]
    %v125 = vld [vmem:[#allocation5 + $0x8] sm:$0xff]
    %v126 = vld [vmem:[#allocation5 + $0x10] sm:$0xff]
    %v127 = vld [vmem:[#allocation5 + $0x18] sm:$0xff]
    %v128 = vld [vmem:[#allocation5 + $0x20] sm:$0xff]
    %v129 = vld [vmem:[#allocation5 + $0x28] sm:$0xff]
    %v130 = vld [vmem:[#allocation5 + $0x30] sm:$0xff]
    %v131 = vld [vmem:[#allocation5 + $0x38] sm:$0xff]
    %v132 = vld [vmem:[#allocation5 + $0x40] sm:$0xff]
    %v133 = vld [vmem:[#allocation5 + $0x48] sm:$0xff]
    %v134 = vld [vmem:[#allocation5 + $0x50] sm:$0xff]
    %v135 = vld [vmem:[#allocation5 + $0x58] sm:$0xff]
    %v136 = vld [vmem:[#allocation5 + $0x60] sm:$0xff]
    %v137 = vld [vmem:[#allocation5 + $0x68] sm:$0xff]
    %v138 = vld [vmem:[#allocation5 + $0x70] sm:$0xff]
    %v139 = vld [vmem:[#allocation5 + $0x78] sm:$0xff]
    %v140 = vld [vmem:[#allocation5 + $0x80] sm:$0xff]
    %v141 = vld [vmem:[#allocation5 + $0x88] sm:$0xff]
    %v142 = vld [vmem:[#allocation5 + $0x90] sm:$0xff]
    %v143 = vld [vmem:[#allocation5 + $0x98] sm:$0xff]
    %v144 = vld [vmem:[#allocation7] sm:$0x1f]
    %v146 = vperm.slane %v144, 0
    %v147 = vperm.slane %v144, 1
    %v148 = vperm.slane %v144, 2
    %v149 = vperm.slane %v144, 3
    %v150 = vperm.slane %v144, 4
    %vm156 = vcmask 261120
    %v158 = vsel %vm156, %v123, 0
    %160 = vmatpush.msra.mxu0 0.0
    %161 = vmatpush.msra.mxu0 0.0
    %162 = vmatpush.msra.mxu0 0.0
    %163 = vmatpush.msra.mxu0 0.0
    %164 = vmatpush.msra.mxu0 0.0
    %165 = vmatpush.msra.mxu0 0.0
    %166 = vmatpush.msra.mxu0 0.0
    %167 = vmatpush.msra.mxu0 0.0
    %168 = vmatpush.msra.mxu0 0.0
    %169 = vmatpush.msra.mxu0 0.0
    %170 = vmatpush.msra.mxu0 0.0
    %171 = vmatpush.msra.mxu0 0.0
    %172 = vmatpush.msra.mxu0 %v139
    %173 = vmatpush.msra.mxu0 %v134
    %174 = vmatpush.msra.mxu0 %v129
    %175 = vmatpush.msra.mxu0 %v124
    %176 = vmatmul.f32.gmra.mxu0 %v158
    %v177 = vpop.f32.mrf.mxu0
    %v178 = vadd.f32 %v146, %v177
    %179 = vdwg.mxu0
    %180 = vmatpush.msra.mxu0 0.0
    %181 = vmatpush.msra.mxu0 0.0
    %182 = vmatpush.msra.mxu0 0.0
    %183 = vmatpush.msra.mxu0 0.0
    %184 = vmatpush.msra.mxu0 0.0
    %185 = vmatpush.msra.mxu0 0.0
    %186 = vmatpush.msra.mxu0 0.0
    %187 = vmatpush.msra.mxu0 0.0
    %188 = vmatpush.msra.mxu0 0.0
    %189 = vmatpush.msra.mxu0 0.0
    %190 = vmatpush.msra.mxu0 0.0
    %191 = vmatpush.msra.mxu0 0.0
    %192 = vmatpush.msra.mxu0 %v140
    %193 = vmatpush.msra.mxu0 %v135
    %194 = vmatpush.msra.mxu0 %v130
    %195 = vmatpush.msra.mxu0 %v125
    %196 = vmatmul.f32.gmra.mxu0 %v158
    %v197 = vpop.f32.mrf.mxu0
    %v198 = vadd.f32 %v147, %v197
    %199 = vdwg.mxu0
    %200 = vmatpush.msra.mxu0 0.0
    %201 = vmatpush.msra.mxu0 0.0
    %202 = vmatpush.msra.mxu0 0.0
    %203 = vmatpush.msra.mxu0 0.0
    %204 = vmatpush.msra.mxu0 0.0
    %205 = vmatpush.msra.mxu0 0.0
    %206 = vmatpush.msra.mxu0 0.0
    %207 = vmatpush.msra.mxu0 0.0
    %208 = vmatpush.msra.mxu0 0.0
    %209 = vmatpush.msra.mxu0 0.0
    %210 = vmatpush.msra.mxu0 0.0
    %211 = vmatpush.msra.mxu0 0.0
    %212 = vmatpush.msra.mxu0 %v141
    %213 = vmatpush.msra.mxu0 %v136
    %214 = vmatpush.msra.mxu0 %v131
    %215 = vmatpush.msra.mxu0 %v126
    %216 = vmatmul.f32.gmra.mxu0 %v158
    %v217 = vpop.f32.mrf.mxu0
    %v218 = vadd.f32 %v148, %v217
    %219 = vdwg.mxu0
    %220 = vmatpush.msra.mxu0 0.0
    %221 = vmatpush.msra.mxu0 0.0
    %222 = vmatpush.msra.mxu0 0.0
    %223 = vmatpush.msra.mxu0 0.0
    %224 = vmatpush.msra.mxu0 0.0
    %225 = vmatpush.msra.mxu0 0.0
    %226 = vmatpush.msra.mxu0 0.0
    %227 = vmatpush.msra.mxu0 0.0
    %228 = vmatpush.msra.mxu0 0.0
    %229 = vmatpush.msra.mxu0 0.0
    %230 = vmatpush.msra.mxu0 0.0
    %231 = vmatpush.msra.mxu0 0.0
    %232 = vmatpush.msra.mxu0 %v142
    %233 = vmatpush.msra.mxu0 %v137
    %234 = vmatpush.msra.mxu0 %v132
    %235 = vmatpush.msra.mxu0 %v127
    %236 = vmatmul.f32.gmra.mxu0 %v158
    %v237 = vpop.f32.mrf.mxu0
    %v238 = vadd.f32 %v149, %v237
    %239 = vdwg.mxu0
    %240 = vmatpush.msra.mxu0 0.0
    %241 = vmatpush.msra.mxu0 0.0
    %242 = vmatpush.msra.mxu0 0.0
    %243 = vmatpush.msra.mxu0 0.0
    %244 = vmatpush.msra.mxu0 0.0
    %245 = vmatpush.msra.mxu0 0.0
    %246 = vmatpush.msra.mxu0 0.0
    %247 = vmatpush.msra.mxu0 0.0
    %248 = vmatpush.msra.mxu0 0.0
    %249 = vmatpush.msra.mxu0 0.0
    %250 = vmatpush.msra.mxu0 0.0
    %251 = vmatpush.msra.mxu0 0.0
    %252 = vmatpush.msra.mxu0 %v143
    %253 = vmatpush.msra.mxu0 %v138
    %254 = vmatpush.msra.mxu0 %v133
    %255 = vmatpush.msra.mxu0 %v128
    %256 = vmatmul.f32.gmra.mxu0 %v158
    %v257 = vpop.f32.mrf.mxu0
    %v258 = vadd.f32 %v150, %v257
    %259 = vdwg.mxu0
    %v260 = vmax.f32 %v178, 0.0
    %v261 = vmax.f32 %v198, 0.0
    %v262 = vmax.f32 %v218, 0.0
    %v263 = vmax.f32 %v238, 0.0
    %v264 = vmax.f32 %v258, 0.0
    %v265 = vld [vmem:[#allocation8] sm:$0xff]
    %v266 = vld [vmem:[#allocation8 + $0x8] sm:$0xff]
    %v267 = vld [vmem:[#allocation8 + $0x10] sm:$0xff]
    %v268 = vld [vmem:[#allocation8 + $0x18] sm:$0xff]
    %v269 = vld [vmem:[#allocation8 + $0x20] sm:$0xff]
    %v270 = vld [vmem:[#allocation8 + $0x28] sm:$0xff]
    %v271 = vld [vmem:[#allocation8 + $0x30] sm:$0xff]
    %v272 = vld [vmem:[#allocation8 + $0x38] sm:$0xff]
    %v273 = vld [vmem:[#allocation8 + $0x40] sm:$0xff]
    %v274 = vld [vmem:[#allocation8 + $0x48] sm:$0xff]
    %v275 = vld [vmem:[#allocation8 + $0x50] sm:$0xff]
    %v276 = vld [vmem:[#allocation8 + $0x58] sm:$0xff]
    %v277 = vld [vmem:[#allocation8 + $0x60] sm:$0xff]
    %v278 = vld [vmem:[#allocation8 + $0x68] sm:$0xff]
    %v279 = vld [vmem:[#allocation8 + $0x70] sm:$0xff]
    %v280 = vld [vmem:[#allocation8 + $0x78] sm:$0xff]
    %v281 = vld [vmem:[#allocation8 + $0x80] sm:$0xff]
    %v282 = vld [vmem:[#allocation8 + $0x88] sm:$0xff]
    %v283 = vld [vmem:[#allocation8 + $0x90] sm:$0xff]
    %v284 = vld [vmem:[#allocation8 + $0x98] sm:$0xff]
    %v285 = vld [vmem:[#allocation8 + $0xa0] sm:$0xff]
    %v286 = vld [vmem:[#allocation8 + $0xa8] sm:$0xff]
    %v287 = vld [vmem:[#allocation8 + $0xb0] sm:$0xff]
    %v288 = vld [vmem:[#allocation8 + $0xb8] sm:$0xff]
    %v289 = vld [vmem:[#allocation8 + $0xc0] sm:$0xff]
    %v290 = vld [vmem:[#allocation8 + $0xc8] sm:$0xff]
    %v291 = vld [vmem:[#allocation8 + $0xd0] sm:$0xff]
    %v292 = vld [vmem:[#allocation8 + $0xd8] sm:$0xff]
    %v293 = vld [vmem:[#allocation8 + $0xe0] sm:$0xff]
    %v294 = vld [vmem:[#allocation8 + $0xe8] sm:$0xff]
    %v295 = vld [vmem:[#allocation8 + $0xf0] sm:$0xff]
    %v296 = vld [vmem:[#allocation8 + $0xf8] sm:$0xff]
    %v297 = vld [vmem:[#allocation8 + $0x100] sm:$0xff]
    %v298 = vld [vmem:[#allocation8 + $0x108] sm:$0xff]
    %v299 = vld [vmem:[#allocation8 + $0x110] sm:$0xff]
    %v300 = vld [vmem:[#allocation8 + $0x118] sm:$0xff]
    %v301 = vld [vmem:[#allocation8 + $0x120] sm:$0xff]
    %v302 = vld [vmem:[#allocation8 + $0x128] sm:$0xff]
    %v303 = vld [vmem:[#allocation8 + $0x130] sm:$0xff]
    %v304 = vld [vmem:[#allocation8 + $0x138] sm:$0xff]
    %v305 = vld [vmem:[#allocation8 + $0x140] sm:$0xff]
    %v306 = vld [vmem:[#allocation8 + $0x148] sm:$0xff]
    %v307 = vld [vmem:[#allocation8 + $0x150] sm:$0xff]
    %v308 = vld [vmem:[#allocation8 + $0x158] sm:$0xff]
    %v309 = vld [vmem:[#allocation8 + $0x160] sm:$0xff]
    %v310 = vld [vmem:[#allocation8 + $0x168] sm:$0xff]
    %v311 = vld [vmem:[#allocation8 + $0x170] sm:$0xff]
    %v312 = vld [vmem:[#allocation8 + $0x178] sm:$0xff]
    %v313 = vld [vmem:[#allocation8 + $0x180] sm:$0xff]
    %v314 = vld [vmem:[#allocation8 + $0x188] sm:$0xff]
    %v315 = vld [vmem:[#allocation8 + $0x190] sm:$0xff]
    %v316 = vld [vmem:[#allocation8 + $0x198] sm:$0xff]
    %v317 = vld [vmem:[#allocation8 + $0x1a0] sm:$0xff]
    %v318 = vld [vmem:[#allocation8 + $0x1a8] sm:$0xff]
    %v319 = vld [vmem:[#allocation8 + $0x1b0] sm:$0xff]
    %v320 = vld [vmem:[#allocation8 + $0x1b8] sm:$0xff]
    %v321 = vld [vmem:[#allocation8 + $0x1c0] sm:$0xff]
    %v322 = vld [vmem:[#allocation8 + $0x1c8] sm:$0xff]
    %v323 = vld [vmem:[#allocation8 + $0x1d0] sm:$0xff]
    %v324 = vld [vmem:[#allocation8 + $0x1d8] sm:$0xff]
    %v325 = vld [vmem:[#allocation8 + $0x1e0] sm:$0xff]
    %v326 = vld [vmem:[#allocation8 + $0x1e8] sm:$0xff]
    %v327 = vld [vmem:[#allocation8 + $0x1f0] sm:$0xff]
    %v328 = vld [vmem:[#allocation8 + $0x1f8] sm:$0xff]
    %v329 = vld [vmem:[#allocation8 + $0x200] sm:$0xff]
    %v330 = vld [vmem:[#allocation8 + $0x208] sm:$0xff]
    %v331 = vld [vmem:[#allocation8 + $0x210] sm:$0xff]
    %v332 = vld [vmem:[#allocation8 + $0x218] sm:$0xff]
    %v333 = vld [vmem:[#allocation8 + $0x220] sm:$0xff]
    %v334 = vld [vmem:[#allocation8 + $0x228] sm:$0xff]
    %v335 = vld [vmem:[#allocation8 + $0x230] sm:$0xff]
    %v336 = vld [vmem:[#allocation8 + $0x238] sm:$0xff]
    %v337 = vld [vmem:[#allocation8 + $0x240] sm:$0xff]
    %v338 = vld [vmem:[#allocation8 + $0x248] sm:$0xff]
    %v339 = vld [vmem:[#allocation8 + $0x250] sm:$0xff]
    %v340 = vld [vmem:[#allocation8 + $0x258] sm:$0xff]
    %v341 = vld [vmem:[#allocation8 + $0x260] sm:$0xff]
    %v342 = vld [vmem:[#allocation8 + $0x268] sm:$0xff]
    %v343 = vld [vmem:[#allocation8 + $0x270] sm:$0xff]
    %v344 = vld [vmem:[#allocation8 + $0x278] sm:$0xff]
    %v345 = vld [vmem:[#allocation8 + $0x280] sm:$0xff]
    %v346 = vld [vmem:[#allocation8 + $0x288] sm:$0xff]
    %v347 = vld [vmem:[#allocation8 + $0x290] sm:$0xff]
    %v348 = vld [vmem:[#allocation8 + $0x298] sm:$0xff]
    %v349 = vld [vmem:[#allocation8 + $0x2a0] sm:$0xff]
    %v350 = vld [vmem:[#allocation8 + $0x2a8] sm:$0xff]
    %v351 = vld [vmem:[#allocation8 + $0x2b0] sm:$0xff]
    %v352 = vld [vmem:[#allocation8 + $0x2b8] sm:$0xff]
    %v353 = vld [vmem:[#allocation8 + $0x2c0] sm:$0xff]
    %v354 = vld [vmem:[#allocation8 + $0x2c8] sm:$0xff]
    %v355 = vld [vmem:[#allocation8 + $0x2d0] sm:$0xff]
    %v356 = vld [vmem:[#allocation8 + $0x2d8] sm:$0xff]
    %v357 = vld [vmem:[#allocation8 + $0x2e0] sm:$0xff]
    %v358 = vld [vmem:[#allocation8 + $0x2e8] sm:$0xff]
    %v359 = vld [vmem:[#allocation8 + $0x2f0] sm:$0xff]
    %v360 = vld [vmem:[#allocation8 + $0x2f8] sm:$0xff]
    %v361 = vld [vmem:[#allocation8 + $0x300] sm:$0xff]
    %v362 = vld [vmem:[#allocation8 + $0x308] sm:$0xff]
    %v363 = vld [vmem:[#allocation8 + $0x310] sm:$0xff]
    %v364 = vld [vmem:[#allocation8 + $0x318] sm:$0xff]
    %v365 = vld [vmem:[#allocation8 + $0x320] sm:$0xff]
    %v366 = vld [vmem:[#allocation8 + $0x328] sm:$0xff]
    %v367 = vld [vmem:[#allocation8 + $0x330] sm:$0xff]
    %v368 = vld [vmem:[#allocation8 + $0x338] sm:$0xff]
    %v369 = vld [vmem:[#allocation8 + $0x340] sm:$0xff]
    %v370 = vld [vmem:[#allocation8 + $0x348] sm:$0xff]
    %v371 = vld [vmem:[#allocation8 + $0x350] sm:$0xff]
    %v372 = vld [vmem:[#allocation8 + $0x358] sm:$0xff]
    %v373 = vld [vmem:[#allocation8 + $0x360] sm:$0xff]
    %v374 = vld [vmem:[#allocation8 + $0x368] sm:$0xff]
    %v375 = vld [vmem:[#allocation8 + $0x370] sm:$0xff]
    %v376 = vld [vmem:[#allocation8 + $0x378] sm:$0xff]
    %v377 = vld [vmem:[#allocation8 + $0x380] sm:$0xff]
    %v378 = vld [vmem:[#allocation8 + $0x388] sm:$0xff]
    %v379 = vld [vmem:[#allocation8 + $0x390] sm:$0xff]
    %v380 = vld [vmem:[#allocation8 + $0x398] sm:$0xff]
    %v381 = vld [vmem:[#allocation8 + $0x3a0] sm:$0xff]
    %v382 = vld [vmem:[#allocation8 + $0x3a8] sm:$0xff]
    %v383 = vld [vmem:[#allocation8 + $0x3b0] sm:$0xff]
    %v384 = vld [vmem:[#allocation8 + $0x3b8] sm:$0xff]
    %v385 = vld [vmem:[#allocation8 + $0x3c0] sm:$0xff]
    %v386 = vld [vmem:[#allocation8 + $0x3c8] sm:$0xff]
    %v387 = vld [vmem:[#allocation8 + $0x3d0] sm:$0xff]
    %v388 = vld [vmem:[#allocation8 + $0x3d8] sm:$0xff]
    %v389 = vld [vmem:[#allocation8 + $0x3e0] sm:$0xff]
    %v390 = vld [vmem:[#allocation8 + $0x3e8] sm:$0xff]
    %v391 = vld [vmem:[#allocation8 + $0x3f0] sm:$0xff]
    %v392 = vld [vmem:[#allocation8 + $0x3f8] sm:$0xff]
    %v393 = vld [vmem:[#allocation8 + $0x400] sm:$0xff]
    %v394 = vld [vmem:[#allocation8 + $0x408] sm:$0xff]
    %v395 = vld [vmem:[#allocation8 + $0x410] sm:$0xff]
    %v396 = vld [vmem:[#allocation8 + $0x418] sm:$0xff]
    %v397 = vld [vmem:[#allocation8 + $0x420] sm:$0xff]
    %v398 = vld [vmem:[#allocation8 + $0x428] sm:$0xff]
    %v399 = vld [vmem:[#allocation8 + $0x430] sm:$0xff]
    %v400 = vld [vmem:[#allocation8 + $0x438] sm:$0xff]
    %v401 = vld [vmem:[#allocation8 + $0x440] sm:$0xff]
    %v402 = vld [vmem:[#allocation8 + $0x448] sm:$0xff]
    %v403 = vld [vmem:[#allocation8 + $0x450] sm:$0xff]
    %v404 = vld [vmem:[#allocation8 + $0x458] sm:$0xff]
    %v405 = vld [vmem:[#allocation8 + $0x460] sm:$0xff]
    %v406 = vld [vmem:[#allocation8 + $0x468] sm:$0xff]
    %v407 = vld [vmem:[#allocation8 + $0x470] sm:$0xff]
    %v408 = vld [vmem:[#allocation8 + $0x478] sm:$0xff]
    %v409 = vld [vmem:[#allocation8 + $0x480] sm:$0xff]
    %v410 = vld [vmem:[#allocation8 + $0x488] sm:$0xff]
    %v411 = vld [vmem:[#allocation8 + $0x490] sm:$0xff]
    %v412 = vld [vmem:[#allocation8 + $0x498] sm:$0xff]
    %v413 = vld [vmem:[#allocation8 + $0x4a0] sm:$0xff]
    %v414 = vld [vmem:[#allocation8 + $0x4a8] sm:$0xff]
    %v415 = vld [vmem:[#allocation8 + $0x4b0] sm:$0xff]
    %v416 = vld [vmem:[#allocation8 + $0x4b8] sm:$0xff]
    %v417 = vld [vmem:[#allocation8 + $0x4c0] sm:$0xff]
    %v418 = vld [vmem:[#allocation8 + $0x4c8] sm:$0xff]
    %v419 = vld [vmem:[#allocation8 + $0x4d0] sm:$0xff]
    %v420 = vld [vmem:[#allocation8 + $0x4d8] sm:$0xff]
    %v421 = vld [vmem:[#allocation8 + $0x4e0] sm:$0xff]
    %v422 = vld [vmem:[#allocation8 + $0x4e8] sm:$0xff]
    %v423 = vld [vmem:[#allocation8 + $0x4f0] sm:$0xff]
    %v424 = vld [vmem:[#allocation8 + $0x4f8] sm:$0xff]
    %v425 = vld [vmem:[%s4] sm:$0x3]
    %v427 = vperm.slane %v425, 0
    %v428 = vperm.slane %v425, 1
    %431 = vmatpush.msra.mxu0 %v295
    %432 = vmatpush.msra.mxu0 %v293
    %433 = vmatpush.msra.mxu0 %v291
    %434 = vmatpush.msra.mxu0 %v289
    %435 = vmatpush.msra.mxu0 %v287
    %436 = vmatpush.msra.mxu0 %v285
    %437 = vmatpush.msra.mxu0 %v283
    %438 = vmatpush.msra.mxu0 %v281
    %439 = vmatpush.msra.mxu0 %v279
    %440 = vmatpush.msra.mxu0 %v277
    %441 = vmatpush.msra.mxu0 %v275
    %442 = vmatpush.msra.mxu0 %v273
    %443 = vmatpush.msra.mxu0 %v271
    %444 = vmatpush.msra.mxu0 %v269
    %445 = vmatpush.msra.mxu0 %v267
    %446 = vmatpush.msra.mxu0 %v265
    %447 = vmatmul.f32.gmra.mxu0 %v260
    %v448 = vpop.f32.mrf.mxu0
    %v449 = vadd.f32 %v427, %v448
    %450 = vdwg.mxu0
    %451 = vmatpush.msra.mxu0 %v327
    %452 = vmatpush.msra.mxu0 %v325
    %453 = vmatpush.msra.mxu0 %v323
    %454 = vmatpush.msra.mxu0 %v321
    %455 = vmatpush.msra.mxu0 %v319
    %456 = vmatpush.msra.mxu0 %v317
    %457 = vmatpush.msra.mxu0 %v315
    %458 = vmatpush.msra.mxu0 %v313
    %459 = vmatpush.msra.mxu0 %v311
    %460 = vmatpush.msra.mxu0 %v309
    %461 = vmatpush.msra.mxu0 %v307
    %462 = vmatpush.msra.mxu0 %v305
    %463 = vmatpush.msra.mxu0 %v303
    %464 = vmatpush.msra.mxu0 %v301
    %465 = vmatpush.msra.mxu0 %v299
    %466 = vmatpush.msra.mxu0 %v297
    %467 = vmatmul.f32.gmra.mxu0 %v261
    %v468 = vpop.f32.mrf.mxu0
    %v469 = vadd.f32 %v449, %v468
    %470 = vdwg.mxu0
    %471 = vmatpush.msra.mxu0 %v359
    %472 = vmatpush.msra.mxu0 %v357
    %473 = vmatpush.msra.mxu0 %v355
    %474 = vmatpush.msra.mxu0 %v353
    %475 = vmatpush.msra.mxu0 %v351
    %476 = vmatpush.msra.mxu0 %v349
    %477 = vmatpush.msra.mxu0 %v347
    %478 = vmatpush.msra.mxu0 %v345
    %479 = vmatpush.msra.mxu0 %v343
    %480 = vmatpush.msra.mxu0 %v341
    %481 = vmatpush.msra.mxu0 %v339
    %482 = vmatpush.msra.mxu0 %v337
    %483 = vmatpush.msra.mxu0 %v335
    %484 = vmatpush.msra.mxu0 %v333
    %485 = vmatpush.msra.mxu0 %v331
    %486 = vmatpush.msra.mxu0 %v329
    %487 = vmatmul.f32.gmra.mxu0 %v262
    %v488 = vpop.f32.mrf.mxu0
    %v489 = vadd.f32 %v469, %v488
    %490 = vdwg.mxu0
    %491 = vmatpush.msra.mxu0 %v391
    %492 = vmatpush.msra.mxu0 %v389
    %493 = vmatpush.msra.mxu0 %v387
    %494 = vmatpush.msra.mxu0 %v385
    %495 = vmatpush.msra.mxu0 %v383
    %496 = vmatpush.msra.mxu0 %v381
    %497 = vmatpush.msra.mxu0 %v379
    %498 = vmatpush.msra.mxu0 %v377
    %499 = vmatpush.msra.mxu0 %v375
    %500 = vmatpush.msra.mxu0 %v373
    %501 = vmatpush.msra.mxu0 %v371
    %502 = vmatpush.msra.mxu0 %v369
    %503 = vmatpush.msra.mxu0 %v367
    %504 = vmatpush.msra.mxu0 %v365
    %505 = vmatpush.msra.mxu0 %v363
    %506 = vmatpush.msra.mxu0 %v361
    %507 = vmatmul.f32.gmra.mxu0 %v263
    %v508 = vpop.f32.mrf.mxu0
    %v509 = vadd.f32 %v489, %v508
    %510 = vdwg.mxu0
    %511 = vmatpush.msra.mxu0 %v423
    %512 = vmatpush.msra.mxu0 %v421
    %513 = vmatpush.msra.mxu0 %v419
    %514 = vmatpush.msra.mxu0 %v417
    %515 = vmatpush.msra.mxu0 %v415
    %516 = vmatpush.msra.mxu0 %v413
    %517 = vmatpush.msra.mxu0 %v411
    %518 = vmatpush.msra.mxu0 %v409
    %519 = vmatpush.msra.mxu0 %v407
    %520 = vmatpush.msra.mxu0 %v405
    %521 = vmatpush.msra.mxu0 %v403
    %522 = vmatpush.msra.mxu0 %v401
    %523 = vmatpush.msra.mxu0 %v399
    %524 = vmatpush.msra.mxu0 %v397
    %525 = vmatpush.msra.mxu0 %v395
    %526 = vmatpush.msra.mxu0 %v393
    %527 = vmatmul.f32.gmra.mxu0 %v264
    %v528 = vpop.f32.mrf.mxu0
    %v529 = vadd.f32 %v509, %v528
    %530 = vdwg.mxu0
    %531 = vmatpush.msra.mxu0 %v296
    %532 = vmatpush.msra.mxu0 %v294
    %533 = vmatpush.msra.mxu0 %v292
    %534 = vmatpush.msra.mxu0 %v290
    %535 = vmatpush.msra.mxu0 %v288
    %536 = vmatpush.msra.mxu0 %v286
    %537 = vmatpush.msra.mxu0 %v284
    %538 = vmatpush.msra.mxu0 %v282
    %539 = vmatpush.msra.mxu0 %v280
    %540 = vmatpush.msra.mxu0 %v278
    %541 = vmatpush.msra.mxu0 %v276
    %542 = vmatpush.msra.mxu0 %v274
    %543 = vmatpush.msra.mxu0 %v272
    %544 = vmatpush.msra.mxu0 %v270
    %545 = vmatpush.msra.mxu0 %v268
    %546 = vmatpush.msra.mxu0 %v266
    %547 = vmatmul.f32.gmra.mxu0 %v260
    %v548 = vpop.f32.mrf.mxu0
    %v549 = vadd.f32 %v428, %v548
    %550 = vdwg.mxu0
    %551 = vmatpush.msra.mxu0 %v328
    %552 = vmatpush.msra.mxu0 %v326
    %553 = vmatpush.msra.mxu0 %v324
    %554 = vmatpush.msra.mxu0 %v322
    %555 = vmatpush.msra.mxu0 %v320
    %556 = vmatpush.msra.mxu0 %v318
    %557 = vmatpush.msra.mxu0 %v316
    %558 = vmatpush.msra.mxu0 %v314
    %559 = vmatpush.msra.mxu0 %v312
    %560 = vmatpush.msra.mxu0 %v310
    %561 = vmatpush.msra.mxu0 %v308
    %562 = vmatpush.msra.mxu0 %v306
    %563 = vmatpush.msra.mxu0 %v304
    %564 = vmatpush.msra.mxu0 %v302
    %565 = vmatpush.msra.mxu0 %v300
    %566 = vmatpush.msra.mxu0 %v298
    %567 = vmatmul.f32.gmra.mxu0 %v261
    %v568 = vpop.f32.mrf.mxu0
    %v569 = vadd.f32 %v549, %v568
    %570 = vdwg.mxu0
    %571 = vmatpush.msra.mxu0 %v360
    %572 = vmatpush.msra.mxu0 %v358
    %573 = vmatpush.msra.mxu0 %v356
    %574 = vmatpush.msra.mxu0 %v354
    %575 = vmatpush.msra.mxu0 %v352
    %576 = vmatpush.msra.mxu0 %v350
    %577 = vmatpush.msra.mxu0 %v348
    %578 = vmatpush.msra.mxu0 %v346
    %579 = vmatpush.msra.mxu0 %v344
    %580 = vmatpush.msra.mxu0 %v342
    %581 = vmatpush.msra.mxu0 %v340
    %582 = vmatpush.msra.mxu0 %v338
    %583 = vmatpush.msra.mxu0 %v336
    %584 = vmatpush.msra.mxu0 %v334
    %585 = vmatpush.msra.mxu0 %v332
    %586 = vmatpush.msra.mxu0 %v330
    %587 = vmatmul.f32.gmra.mxu0 %v262
    %v588 = vpop.f32.mrf.mxu0
    %v589 = vadd.f32 %v569, %v588
    %590 = vdwg.mxu0
    %591 = vmatpush.msra.mxu0 %v392
    %592 = vmatpush.msra.mxu0 %v390
    %593 = vmatpush.msra.mxu0 %v388
    %594 = vmatpush.msra.mxu0 %v386
    %595 = vmatpush.msra.mxu0 %v384
    %596 = vmatpush.msra.mxu0 %v382
    %597 = vmatpush.msra.mxu0 %v380
    %598 = vmatpush.msra.mxu0 %v378
    %599 = vmatpush.msra.mxu0 %v376
    %600 = vmatpush.msra.mxu0 %v374
    %601 = vmatpush.msra.mxu0 %v372
    %602 = vmatpush.msra.mxu0 %v370
    %603 = vmatpush.msra.mxu0 %v368
    %604 = vmatpush.msra.mxu0 %v366
    %605 = vmatpush.msra.mxu0 %v364
    %606 = vmatpush.msra.mxu0 %v362
    %607 = vmatmul.f32.gmra.mxu0 %v263
    %v608 = vpop.f32.mrf.mxu0
    %v609 = vadd.f32 %v589, %v608
    %610 = vdwg.mxu0
    %611 = vmatpush.msra.mxu0 %v424
    %612 = vmatpush.msra.mxu0 %v422
    %613 = vmatpush.msra.mxu0 %v420
    %614 = vmatpush.msra.mxu0 %v418
    %615 = vmatpush.msra.mxu0 %v416
    %616 = vmatpush.msra.mxu0 %v414
    %617 = vmatpush.msra.mxu0 %v412
    %618 = vmatpush.msra.mxu0 %v410
    %619 = vmatpush.msra.mxu0 %v408
    %620 = vmatpush.msra.mxu0 %v406
    %621 = vmatpush.msra.mxu0 %v404
    %622 = vmatpush.msra.mxu0 %v402
    %623 = vmatpush.msra.mxu0 %v400
    %624 = vmatpush.msra.mxu0 %v398
    %625 = vmatpush.msra.mxu0 %v396
    %626 = vmatpush.msra.mxu0 %v394
    %627 = vmatmul.f32.gmra.mxu0 %v264
    %v628 = vpop.f32.mrf.mxu0
    %v629 = vadd.f32 %v609, %v628
    %630 = vdwg.mxu0
    %v631 = vmax.f32 %v529, 0.0
    %v632 = vmax.f32 %v629, 0.0
    %v633 = vld [vmem:[#allocation10] sm:$0xff]
    %v634 = vld [vmem:[#allocation10 + $0x8] sm:$0xff]
    %v635 = vld [vmem:[#allocation10 + $0x10] sm:$0xff]
    %v636 = vld [vmem:[#allocation10 + $0x18] sm:$0xff]
    %v637 = vld [vmem:[#allocation10 + $0x20] sm:$0xff]
    %v638 = vld [vmem:[#allocation10 + $0x28] sm:$0xff]
    %v639 = vld [vmem:[#allocation10 + $0x30] sm:$0xff]
    %v640 = vld [vmem:[#allocation10 + $0x38] sm:$0xff]
    %v641 = vld [vmem:[#allocation10 + $0x40] sm:$0xff]
    %v642 = vld [vmem:[#allocation10 + $0x48] sm:$0xff]
    %v643 = vld [vmem:[#allocation10 + $0x50] sm:$0xff]
    %v644 = vld [vmem:[#allocation10 + $0x58] sm:$0xff]
    %v645 = vld [vmem:[#allocation10 + $0x60] sm:$0xff]
    %v646 = vld [vmem:[#allocation10 + $0x68] sm:$0xff]
    %v647 = vld [vmem:[#allocation10 + $0x70] sm:$0xff]
    %v648 = vld [vmem:[#allocation10 + $0x78] sm:$0xff]
    %v649 = vld [vmem:[#allocation10 + $0x80] sm:$0xff]
    %v650 = vld [vmem:[#allocation10 + $0x88] sm:$0xff]
    %v651 = vld [vmem:[#allocation10 + $0x90] sm:$0xff]
    %v652 = vld [vmem:[#allocation10 + $0x98] sm:$0xff]
    %v653 = vld [vmem:[#allocation10 + $0xa0] sm:$0xff]
    %v654 = vld [vmem:[#allocation10 + $0xa8] sm:$0xff]
    %v655 = vld [vmem:[#allocation10 + $0xb0] sm:$0xff]
    %v656 = vld [vmem:[#allocation10 + $0xb8] sm:$0xff]
    %v657 = vld [vmem:[#allocation10 + $0xc0] sm:$0xff]
    %v658 = vld [vmem:[#allocation10 + $0xc8] sm:$0xff]
    %v659 = vld [vmem:[#allocation10 + $0xd0] sm:$0xff]
    %v660 = vld [vmem:[#allocation10 + $0xd8] sm:$0xff]
    %v661 = vld [vmem:[#allocation10 + $0xe0] sm:$0xff]
    %v662 = vld [vmem:[#allocation10 + $0xe8] sm:$0xff]
    %v663 = vld [vmem:[#allocation10 + $0xf0] sm:$0xff]
    %v664 = vld [vmem:[#allocation10 + $0xf8] sm:$0xff]
    %v665 = vld [vmem:[%s6] sm:$0x1]
    %v667 = vperm.slane %v665, 0
    %669 = vmatpush.msra.mxu0 %v648
    %670 = vmatpush.msra.mxu0 %v647
    %671 = vmatpush.msra.mxu0 %v646
    %672 = vmatpush.msra.mxu0 %v645
    %673 = vmatpush.msra.mxu0 %v644
    %674 = vmatpush.msra.mxu0 %v643
    %675 = vmatpush.msra.mxu0 %v642
    %676 = vmatpush.msra.mxu0 %v641
    %677 = vmatpush.msra.mxu0 %v640
    %678 = vmatpush.msra.mxu0 %v639
    %679 = vmatpush.msra.mxu0 %v638
    %680 = vmatpush.msra.mxu0 %v637
    %681 = vmatpush.msra.mxu0 %v636
    %682 = vmatpush.msra.mxu0 %v635
    %683 = vmatpush.msra.mxu0 %v634
    %684 = vmatpush.msra.mxu0 %v633
    %685 = vmatmul.f32.gmra.mxu0 %v631
    %v686 = vpop.f32.mrf.mxu0
    %v687 = vadd.f32 %v667, %v686
    %688 = vdwg.mxu0
    %689 = vmatpush.msra.mxu0 %v664
    %690 = vmatpush.msra.mxu0 %v663
    %691 = vmatpush.msra.mxu0 %v662
    %692 = vmatpush.msra.mxu0 %v661
    %693 = vmatpush.msra.mxu0 %v660
    %694 = vmatpush.msra.mxu0 %v659
    %695 = vmatpush.msra.mxu0 %v658
    %696 = vmatpush.msra.mxu0 %v657
    %697 = vmatpush.msra.mxu0 %v656
    %698 = vmatpush.msra.mxu0 %v655
    %699 = vmatpush.msra.mxu0 %v654
    %700 = vmatpush.msra.mxu0 %v653
    %701 = vmatpush.msra.mxu0 %v652
    %702 = vmatpush.msra.mxu0 %v651
    %703 = vmatpush.msra.mxu0 %v650
    %704 = vmatpush.msra.mxu0 %v649
    %705 = vmatmul.f32.gmra.mxu0 %v632
    %v706 = vpop.f32.mrf.mxu0
    %v707 = vadd.f32 %v687, %v706
    %708 = vdwg.mxu0
    %v709 = vmax.f32 %v707, 0.0
    %v710 = vld [vmem:[#allocation11] sm:$0xff]
    %v711 = vld [vmem:[#allocation11 + $0x8] sm:$0xff]
    %v712 = vld [vmem:[#allocation11 + $0x10] sm:$0xff]
    %v713 = vld [vmem:[#allocation11 + $0x18] sm:$0xff]
    %v714 = vld [vmem:[#allocation11 + $0x20] sm:$0xff]
    %v715 = vld [vmem:[#allocation11 + $0x28] sm:$0xff]
    %v716 = vld [vmem:[#allocation11 + $0x30] sm:$0xff]
    %v717 = vld [vmem:[#allocation11 + $0x38] sm:$0xff]
    %v718 = vld [vmem:[#allocation11 + $0x40] sm:$0xff]
    %v719 = vld [vmem:[#allocation11 + $0x48] sm:$0xff]
    %v720 = vld [vmem:[#allocation11 + $0x50] sm:$0xff]
    %v721 = vld [vmem:[#allocation11 + $0x58] sm:$0xff]
    %v722 = vld [vmem:[#allocation11 + $0x60] sm:$0xff]
    %v723 = vld [vmem:[#allocation11 + $0x68] sm:$0xff]
    %v724 = vld [vmem:[#allocation11 + $0x70] sm:$0xff]
    %v725 = vld [vmem:[#allocation11 + $0x78] sm:$0xff]
    %v726 = vld [vmem:[%s8] sm:$0x1]
    %v728 = vperm.slane %v726, 0
    %730 = vmatpush.msra.mxu0 %v725
    %731 = vmatpush.msra.mxu0 %v724
    %732 = vmatpush.msra.mxu0 %v723
    %733 = vmatpush.msra.mxu0 %v722
    %734 = vmatpush.msra.mxu0 %v721
    %735 = vmatpush.msra.mxu0 %v720
    %736 = vmatpush.msra.mxu0 %v719
    %737 = vmatpush.msra.mxu0 %v718
    %738 = vmatpush.msra.mxu0 %v717
    %739 = vmatpush.msra.mxu0 %v716
    %740 = vmatpush.msra.mxu0 %v715
    %741 = vmatpush.msra.mxu0 %v714
    %742 = vmatpush.msra.mxu0 %v713
    %743 = vmatpush.msra.mxu0 %v712
    %744 = vmatpush.msra.mxu0 %v711
    %745 = vmatpush.msra.mxu0 %v710
    %746 = vmatmul.f32.gmra.mxu0 %v709
    %v747 = vpop.f32.mrf.mxu0
    %v748 = vadd.f32 %v728, %v747
    %749 = vdwg.mxu0
    %750 = vst [vmem:[#allocation13] sm:$0xff] %v748
    // Predicated region
    $region62: #{tpu_custom_call.1} parent=1 // pred_check
      _
    $region63: #{tpu_custom_call.1} parent=1 // pred_check_branch
      %752 = sbr.rel (0) target = $region65
    $region64: #{tpu_custom_call.1} parent=1 // pred_region
      %754 = vsyncadd [#allocation4], 0
      %s756 = sshll.u32 [#allocation13], 4
      %s757 = int_to_ptr.vmem [resolvable:$true] %s756
      %s758 = sshll.u32 %s9, 4
      %s759 = int_to_ptr.hbm [resolvable:$true] %s758
      %761 = dma.vmem_to_hbm [thread:$0]  %s757, 128, %s759, [#allocation4]
    $region65: #{tpu_custom_call.1} parent=1 // pred_fallthru
      _
    // Predicated region
    $region66: #{tpu_custom_call.1} parent=1 // pred_check
      _
    $region67: #{tpu_custom_call.1} parent=1 // pred_check_branch
      %763 = sbr.rel (0) target = $region69
    $region68: #{tpu_custom_call.1} parent=1 // pred_region
      %765 = dma.done [#allocation4], 128
    $region69: #{tpu_custom_call.1} parent=1 // pred_fallthru
      _
    %766 = vsyncpa [#allocation3], 1
    %767 = vsyncpa [#allocation6], 1
    %768 = vsyncpa [#allocation9], 1
    %769 = vsyncpa [#allocation12], 1
    %770 = vsyncpa [#allocation4], 1

// kernel: tpu_custom_call.1
$region0: #{tpu_custom_call.1}
  #allocation0 [shape = 'u32[]', space=smem, size = 0x4, offset = 0x4, fixed_abs, tag = 'smem constant byte address 0x4 - core index']
  #allocation1 [shape = 'u32[72,128]{1,0:T(1,128)}', space=vmem, size = 0x9000, scoped, tag = 'internal scratch']
  %s0 = inlined_call_operand.hbm [shape: f32[8,32], index: 0, kind: input, shape index: {}]
  %s1 = inlined_call_operand.hbm [shape: f32[32,640], index: 1, kind: input, shape index: {}]
  %s2 = inlined_call_operand.hbm [shape: f32[1,640], index: 2, kind: input, shape index: {}]
  %s3 = inlined_call_operand.hbm [shape: f32[640,256], index: 3, kind: input, shape index: {}]
  %s4 = inlined_call_operand.vmem [shape: f32[1,256], index: 4, kind: input, shape index: {}]
  %s5 = inlined_call_operand.hbm [shape: f32[256,128], index: 5, kind: input, shape index: {}]
  %s6 = inlined_call_operand.vmem [shape: f32[1,128], index: 6, kind: input, shape index: {}]
  %s7 = inlined_call_operand.hbm [shape: f32[128,128], index: 7, kind: input, shape index: {}]
  %s8 = inlined_call_operand.vmem [shape: f32[1,128], index: 8, kind: input, shape index: {}]
  %s9 = inlined_call_operand.hbm [shape: f32[8,128], index: 9, kind: output, shape index: {}]
  %s10 = sld [smem:[#allocation0]]
  $region70: #{tpu_custom_call.1} parent=0
    _
  %s12 = ssub.s32 1, %s10
  %s13 = scalar_select 0, %s12, %s10
  $region1: #{tpu_custom_call.1} parent=0
    #allocation2 [shape = 'u8[4096]{0}', space=vmem, size = 0x1000, scoped, tag = 'input window, operand 0, single buffered']
    #allocation3 [shape = 's32[1]{0}', space=sflag, size = 0x4, scoped, tag = 'scoped memory for tpu_custom_call.1']
    #allocation4 [shape = 's32[1]{0}', space=sflag, size = 0x4, scoped, tag = 'scoped memory for tpu_custom_call.1']
    #allocation5 [shape = 'u8[81920]{0}', space=vmem, size = 0x14000, scoped, tag = 'input window, operand 1, single buffered']
    #allocation6 [shape = 's32[1]{0}', space=sflag, size = 0x4, scoped, tag = 'scoped memory for tpu_custom_call.1']
    #allocation7 [shape = 'u8[2560]{0}', space=vmem, size = 0xc00, scoped, tag = 'input window, operand 2, single buffered']
    #allocation8 [shape = 'u8[655360]{0}', space=vmem, size = 0xa0000, scoped, tag = 'input window, operand 3, single buffered']
    #allocation9 [shape = 's32[1]{0}', space=sflag, size = 0x4, scoped, tag = 'scoped memory for tpu_custom_call.1']
    #allocation10 [shape = 'u8[131072]{0}', space=vmem, size = 0x20000, scoped, tag = 'input window, operand 5, single buffered']
    #allocation11 [shape = 'u8[65536]{0}', space=vmem, size = 0x10000, scoped, tag = 'input window, operand 7, single buffered']
    #allocation12 [shape = 's32[1]{0}', space=sflag, size = 0x4, scoped, tag = 'scoped memory for tpu_custom_call.1']
    #allocation13 [shape = 'u8[4096]{0}', space=vmem, size = 0x1000, scoped, tag = 'output window, operand 0, single buffered']
    %14 = vsyncpa [#allocation3], 0
    %15 = vsyncpa [#allocation6], 0
    %16 = vsyncpa [#allocation9], 0
    %17 = vsyncpa [#allocation12], 0
    %18 = vsyncpa [#allocation4], 0
    // Predicated region
    $region2: #{tpu_custom_call.1} parent=1 // pred_check
      _
    $region3: #{tpu_custom_call.1} parent=1 // pred_check_branch
      %20 = sbr.rel (0) target = $region5
    $region4: #{tpu_custom_call.1} parent=1 // pred_region
      %22 = vsyncadd [#allocation3], 0
      %s24 = sshll.u32 %s0, 4
      %s25 = int_to_ptr.hbm [resolvable:$true] %s24
      %s26 = sshll.u32 [#allocation2], 4
      %s27 = int_to_ptr.vmem [resolvable:$true] %s26
      %29 = dma.hbm_to_vmem [thread:$0]  %s25, 128, %s27, [#allocation3]
    $region5: #{tpu_custom_call.1} parent=1 // pred_fallthru
      _
    // Predicated region
    $region6: #{tpu_custom_call.1} parent=1 // pred_check
      _
    $region7: #{tpu_custom_call.1} parent=1 // pred_check_branch
      %31 = sbr.rel (0) target = $region9
    $region8: #{tpu_custom_call.1} parent=1 // pred_region
      %33 = vsyncadd [#allocation6], 0
      %s34 = sshll.u32 %s1, 4
      %s35 = int_to_ptr.hbm [resolvable:$true] %s34
      %s36 = sshll.u32 [#allocation5], 4
      %s37 = int_to_ptr.vmem [resolvable:$true] %s36
      %42 = dma.hbm_to_vmem [thread:$0]  %s35, 2560, %s37, [#allocation6], 640, 640, 40
    $region9: #{tpu_custom_call.1} parent=1 // pred_fallthru
      _
    // Predicated region
    $region10: #{tpu_custom_call.1} parent=1 // pred_check
      _
    $region11: #{tpu_custom_call.1} parent=1 // pred_check_branch
      %44 = sbr.rel (0) target = $region13
    $region12: #{tpu_custom_call.1} parent=1 // pred_region
      %46 = vsyncadd [#allocation6], 0
      %s48 = sshll.u32 %s2, 4
      %s49 = int_to_ptr.hbm [resolvable:$true] %s48
      %s50 = sshll.u32 [#allocation7], 4
      %s51 = int_to_ptr.vmem [resolvable:$true] %s50
      %53 = dma.hbm_to_vmem [thread:$0]  %s49, 80, %s51, [#allocation6]
    $region13: #{tpu_custom_call.1} parent=1 // pred_fallthru
      _
    // Predicated region
    $region14: #{tpu_custom_call.1} parent=1 // pred_check
      _
    $region15: #{tpu_custom_call.1} parent=1 // pred_check_branch
      %55 = sbr.rel (0) target = $region17
    $region16: #{tpu_custom_call.1} parent=1 // pred_region
      %57 = vsyncadd [#allocation9], 0
      %s58 = sshll.u32 %s3, 4
      %s59 = int_to_ptr.hbm [resolvable:$true] %s58
      %s60 = sshll.u32 [#allocation8], 4
      %s61 = int_to_ptr.vmem [resolvable:$true] %s60
      %66 = dma.hbm_to_vmem [thread:$0]  %s59, 20480, %s61, [#allocation9], 256, 256, 16
    $region17: #{tpu_custom_call.1} parent=1 // pred_fallthru
      _
    // Predicated region
    $region18: #{tpu_custom_call.1} parent=1 // pred_check
      _
    $region19: #{tpu_custom_call.1} parent=1 // pred_check_branch
      %68 = sbr.rel (0) target = $region21
    $region20: #{tpu_custom_call.1} parent=1 // pred_region
      _
    $region21: #{tpu_custom_call.1} parent=1 // pred_fallthru
      _
    // Predicated region
    $region22: #{tpu_custom_call.1} parent=1 // pred_check
      _
    $region23: #{tpu_custom_call.1} parent=1 // pred_check_branch
      %70 = sbr.rel (0) target = $region25
    $region24: #{tpu_custom_call.1} parent=1 // pred_region
      %72 = vsyncadd [#allocation9], 0
      %s73 = sshll.u32 %s5, 4
      %s74 = int_to_ptr.hbm [resolvable:$true] %s73
      %s75 = sshll.u32 [#allocation10], 4
      %s76 = int_to_ptr.vmem [resolvable:$true] %s75
      %81 = dma.hbm_to_vmem [thread:$0]  %s74, 4096, %s76, [#allocation9], 128, 128, 8
    $region25: #{tpu_custom_call.1} parent=1 // pred_fallthru
      _
    // Predicated region
    $region26: #{tpu_custom_call.1} parent=1 // pred_check
      _
    $region27: #{tpu_custom_call.1} parent=1 // pred_check_branch
      %83 = sbr.rel (0) target = $region29
    $region28: #{tpu_custom_call.1} parent=1 // pred_region
      _
    $region29: #{tpu_custom_call.1} parent=1 // pred_fallthru
      _
    // Predicated region
    $region30: #{tpu_custom_call.1} parent=1 // pred_check
      _
    $region31: #{tpu_custom_call.1} parent=1 // pred_check_branch
      %85 = sbr.rel (0) target = $region33
    $region32: #{tpu_custom_call.1} parent=1 // pred_region
      %87 = vsyncadd [#allocation12], 0
      %s88 = sshll.u32 %s7, 4
      %s89 = int_to_ptr.hbm [resolvable:$true] %s88
      %s90 = sshll.u32 [#allocation11], 4
      %s91 = int_to_ptr.vmem [resolvable:$true] %s90
      %96 = dma.hbm_to_vmem [thread:$0]  %s89, 2048, %s91, [#allocation12], 128, 128, 8
    $region33: #{tpu_custom_call.1} parent=1 // pred_fallthru
      _
    // Predicated region
    $region34: #{tpu_custom_call.1} parent=1 // pred_check
      _
    $region35: #{tpu_custom_call.1} parent=1 // pred_check_branch
      %98 = sbr.rel (0) target = $region37
    $region36: #{tpu_custom_call.1} parent=1 // pred_region
      _
    $region37: #{tpu_custom_call.1} parent=1 // pred_fallthru
      _
    // Predicated region
    $region38: #{tpu_custom_call.1} parent=1 // pred_check
      _
    $region39: #{tpu_custom_call.1} parent=1 // pred_check_branch
      %100 = sbr.rel (0) target = $region41
    $region40: #{tpu_custom_call.1} parent=1 // pred_region
      %102 = dma.done [#allocation3], 128
    $region41: #{tpu_custom_call.1} parent=1 // pred_fallthru
      _
    // Predicated region
    $region42: #{tpu_custom_call.1} parent=1 // pred_check
      _
    $region43: #{tpu_custom_call.1} parent=1 // pred_check_branch
      %104 = sbr.rel (0) target = $region45
    $region44: #{tpu_custom_call.1} parent=1 // pred_region
      %106 = dma.done [#allocation6], 2560
    $region45: #{tpu_custom_call.1} parent=1 // pred_fallthru
      _
    // Predicated region
    $region46: #{tpu_custom_call.1} parent=1 // pred_check
      _
    $region47: #{tpu_custom_call.1} parent=1 // pred_check_branch
      %108 = sbr.rel (0) target = $region49
    $region48: #{tpu_custom_call.1} parent=1 // pred_region
      %110 = dma.done [#allocation6], 80
    $region49: #{tpu_custom_call.1} parent=1 // pred_fallthru
      _
    // Predicated region
    $region50: #{tpu_custom_call.1} parent=1 // pred_check
      _
    $region51: #{tpu_custom_call.1} parent=1 // pred_check_branch
      %112 = sbr.rel (0) target = $region53
    $region52: #{tpu_custom_call.1} parent=1 // pred_region
      %114 = dma.done [#allocation9], 20480
    $region53: #{tpu_custom_call.1} parent=1 // pred_fallthru
      _
    // Predicated region
    $region54: #{tpu_custom_call.1} parent=1 // pred_check
      _
    $region55: #{tpu_custom_call.1} parent=1 // pred_check_branch
      %116 = sbr.rel (0) target = $region57
    $region56: #{tpu_custom_call.1} parent=1 // pred_region
      %118 = dma.done [#allocation9], 4096
    $region57: #{tpu_custom_call.1} parent=1 // pred_fallthru
      _
    // Predicated region
    $region58: #{tpu_custom_call.1} parent=1 // pred_check
      _
    $region59: #{tpu_custom_call.1} parent=1 // pred_check_branch
      %120 = sbr.rel (0) target = $region61
    $region60: #{tpu_custom_call.1} parent=1 // pred_region
      %122 = dma.done [#allocation12], 2048
    $region61: #{tpu_custom_call.1} parent=1 // pred_fallthru
      _
    %v123 = vld [vmem:[#allocation2] sm:$0xff]
    %v124 = vld [vmem:[#allocation5] sm:$0xff]
    %v125 = vld [vmem:[#allocation5 + $0x8] sm:$0xff]
    %v126 = vld [vmem:[#allocation5 + $0x10] sm:$0xff]
    %v127 = vld [vmem:[#allocation5 + $0x18] sm:$0xff]
    %v128 = vld [vmem:[#allocation5 + $0x20] sm:$0xff]
    %v129 = vld [vmem:[#allocation5 + $0x28] sm:$0xff]
    %v130 = vld [vmem:[#allocation5 + $0x30] sm:$0xff]
    %v131 = vld [vmem:[#allocation5 + $0x38] sm:$0xff]
    %v132 = vld [vmem:[#allocation5 + $0x40] sm:$0xff]
    %v133 = vld [vmem:[#allocation5 + $0x48] sm:$0xff]
    %v134 = vld [vmem:[#allocation5 + $0x50] sm:$0xff]
    %v135 = vld [vmem:[#allocation5 + $0x58] sm:$0xff]
    %v136 = vld [vmem:[#allocation5 + $0x60] sm:$0xff]
    %v137 = vld [vmem:[#allocation5 + $0x68] sm:$0xff]
    %v138 = vld [vmem:[#allocation5 + $0x70] sm:$0xff]
    %v139 = vld [vmem:[#allocation5 + $0x78] sm:$0xff]
    %v140 = vld [vmem:[#allocation5 + $0x80] sm:$0xff]
    %v141 = vld [vmem:[#allocation5 + $0x88] sm:$0xff]
    %v142 = vld [vmem:[#allocation5 + $0x90] sm:$0xff]
    %v143 = vld [vmem:[#allocation5 + $0x98] sm:$0xff]
    %v144 = vld [vmem:[#allocation7] sm:$0x1f]
    %v146 = vperm.slane %v144, 0
    %v147 = vperm.slane %v144, 1
    %v148 = vperm.slane %v144, 2
    %v149 = vperm.slane %v144, 3
    %v150 = vperm.slane %v144, 4
    %vm156 = vcmask 261120
    %v158 = vsel %vm156, %v123, 0
    %160 = vmatpush.msra.mxu0 0.0
    %161 = vmatpush.msra.mxu0 0.0
    %162 = vmatpush.msra.mxu0 0.0
    %163 = vmatpush.msra.mxu0 0.0
    %164 = vmatpush.msra.mxu0 0.0
    %165 = vmatpush.msra.mxu0 0.0
    %166 = vmatpush.msra.mxu0 0.0
    %167 = vmatpush.msra.mxu0 0.0
    %168 = vmatpush.msra.mxu0 0.0
    %169 = vmatpush.msra.mxu0 0.0
    %170 = vmatpush.msra.mxu0 0.0
    %171 = vmatpush.msra.mxu0 0.0
    %172 = vmatpush.msra.mxu0 %v139
    %173 = vmatpush.msra.mxu0 %v134
    %174 = vmatpush.msra.mxu0 %v129
    %175 = vmatpush.msra.mxu0 %v124
    %176 = vmatmul.f32.gmra.mxu0 %v158
    %v177 = vpop.f32.mrf.mxu0
    %v178 = vadd.f32 %v146, %v177
    %179 = vdwg.mxu0
    %180 = vmatpush.msra.mxu0 0.0
    %181 = vmatpush.msra.mxu0 0.0
    %182 = vmatpush.msra.mxu0 0.0
    %183 = vmatpush.msra.mxu0 0.0
    %184 = vmatpush.msra.mxu0 0.0
    %185 = vmatpush.msra.mxu0 0.0
    %186 = vmatpush.msra.mxu0 0.0
    %187 = vmatpush.msra.mxu0 0.0
    %188 = vmatpush.msra.mxu0 0.0
    %189 = vmatpush.msra.mxu0 0.0
    %190 = vmatpush.msra.mxu0 0.0
    %191 = vmatpush.msra.mxu0 0.0
    %192 = vmatpush.msra.mxu0 %v140
    %193 = vmatpush.msra.mxu0 %v135
    %194 = vmatpush.msra.mxu0 %v130
    %195 = vmatpush.msra.mxu0 %v125
    %196 = vmatmul.f32.gmra.mxu0 %v158
    %v197 = vpop.f32.mrf.mxu0
    %v198 = vadd.f32 %v147, %v197
    %199 = vdwg.mxu0
    %200 = vmatpush.msra.mxu0 0.0
    %201 = vmatpush.msra.mxu0 0.0
    %202 = vmatpush.msra.mxu0 0.0
    %203 = vmatpush.msra.mxu0 0.0
    %204 = vmatpush.msra.mxu0 0.0
    %205 = vmatpush.msra.mxu0 0.0
    %206 = vmatpush.msra.mxu0 0.0
    %207 = vmatpush.msra.mxu0 0.0
    %208 = vmatpush.msra.mxu0 0.0
    %209 = vmatpush.msra.mxu0 0.0
    %210 = vmatpush.msra.mxu0 0.0
    %211 = vmatpush.msra.mxu0 0.0
    %212 = vmatpush.msra.mxu0 %v141
    %213 = vmatpush.msra.mxu0 %v136
    %214 = vmatpush.msra.mxu0 %v131
    %215 = vmatpush.msra.mxu0 %v126
    %216 = vmatmul.f32.gmra.mxu0 %v158
    %v217 = vpop.f32.mrf.mxu0
    %v218 = vadd.f32 %v148, %v217
    %219 = vdwg.mxu0
    %220 = vmatpush.msra.mxu0 0.0
    %221 = vmatpush.msra.mxu0 0.0
    %222 = vmatpush.msra.mxu0 0.0
    %223 = vmatpush.msra.mxu0 0.0
    %224 = vmatpush.msra.mxu0 0.0
    %225 = vmatpush.msra.mxu0 0.0
    %226 = vmatpush.msra.mxu0 0.0
    %227 = vmatpush.msra.mxu0 0.0
    %228 = vmatpush.msra.mxu0 0.0
    %229 = vmatpush.msra.mxu0 0.0
    %230 = vmatpush.msra.mxu0 0.0
    %231 = vmatpush.msra.mxu0 0.0
    %232 = vmatpush.msra.mxu0 %v142
    %233 = vmatpush.msra.mxu0 %v137
    %234 = vmatpush.msra.mxu0 %v132
    %235 = vmatpush.msra.mxu0 %v127
    %236 = vmatmul.f32.gmra.mxu0 %v158
    %v237 = vpop.f32.mrf.mxu0
    %v238 = vadd.f32 %v149, %v237
    %239 = vdwg.mxu0
    %240 = vmatpush.msra.mxu0 0.0
    %241 = vmatpush.msra.mxu0 0.0
    %242 = vmatpush.msra.mxu0 0.0
    %243 = vmatpush.msra.mxu0 0.0
    %244 = vmatpush.msra.mxu0 0.0
    %245 = vmatpush.msra.mxu0 0.0
    %246 = vmatpush.msra.mxu0 0.0
    %247 = vmatpush.msra.mxu0 0.0
    %248 = vmatpush.msra.mxu0 0.0
    %249 = vmatpush.msra.mxu0 0.0
    %250 = vmatpush.msra.mxu0 0.0
    %251 = vmatpush.msra.mxu0 0.0
    %252 = vmatpush.msra.mxu0 %v143
    %253 = vmatpush.msra.mxu0 %v138
    %254 = vmatpush.msra.mxu0 %v133
    %255 = vmatpush.msra.mxu0 %v128
    %256 = vmatmul.f32.gmra.mxu0 %v158
    %v257 = vpop.f32.mrf.mxu0
    %v258 = vadd.f32 %v150, %v257
    %259 = vdwg.mxu0
    %v260 = vmax.f32 %v178, 0.0
    %v261 = vmax.f32 %v198, 0.0
    %v262 = vmax.f32 %v218, 0.0
    %v263 = vmax.f32 %v238, 0.0
    %v264 = vmax.f32 %v258, 0.0
    %v265 = vld [vmem:[#allocation8] sm:$0xff]
    %v266 = vld [vmem:[#allocation8 + $0x8] sm:$0xff]
    %v267 = vld [vmem:[#allocation8 + $0x10] sm:$0xff]
    %v268 = vld [vmem:[#allocation8 + $0x18] sm:$0xff]
    %v269 = vld [vmem:[#allocation8 + $0x20] sm:$0xff]
    %v270 = vld [vmem:[#allocation8 + $0x28] sm:$0xff]
    %v271 = vld [vmem:[#allocation8 + $0x30] sm:$0xff]
    %v272 = vld [vmem:[#allocation8 + $0x38] sm:$0xff]
    %v273 = vld [vmem:[#allocation8 + $0x40] sm:$0xff]
    %v274 = vld [vmem:[#allocation8 + $0x48] sm:$0xff]
    %v275 = vld [vmem:[#allocation8 + $0x50] sm:$0xff]
    %v276 = vld [vmem:[#allocation8 + $0x58] sm:$0xff]
    %v277 = vld [vmem:[#allocation8 + $0x60] sm:$0xff]
    %v278 = vld [vmem:[#allocation8 + $0x68] sm:$0xff]
    %v279 = vld [vmem:[#allocation8 + $0x70] sm:$0xff]
    %v280 = vld [vmem:[#allocation8 + $0x78] sm:$0xff]
    %v281 = vld [vmem:[#allocation8 + $0x80] sm:$0xff]
    %v282 = vld [vmem:[#allocation8 + $0x88] sm:$0xff]
    %v283 = vld [vmem:[#allocation8 + $0x90] sm:$0xff]
    %v284 = vld [vmem:[#allocation8 + $0x98] sm:$0xff]
    %v285 = vld [vmem:[#allocation8 + $0xa0] sm:$0xff]
    %v286 = vld [vmem:[#allocation8 + $0xa8] sm:$0xff]
    %v287 = vld [vmem:[#allocation8 + $0xb0] sm:$0xff]
    %v288 = vld [vmem:[#allocation8 + $0xb8] sm:$0xff]
    %v289 = vld [vmem:[#allocation8 + $0xc0] sm:$0xff]
    %v290 = vld [vmem:[#allocation8 + $0xc8] sm:$0xff]
    %v291 = vld [vmem:[#allocation8 + $0xd0] sm:$0xff]
    %v292 = vld [vmem:[#allocation8 + $0xd8] sm:$0xff]
    %v293 = vld [vmem:[#allocation8 + $0xe0] sm:$0xff]
    %v294 = vld [vmem:[#allocation8 + $0xe8] sm:$0xff]
    %v295 = vld [vmem:[#allocation8 + $0xf0] sm:$0xff]
    %v296 = vld [vmem:[#allocation8 + $0xf8] sm:$0xff]
    %v297 = vld [vmem:[#allocation8 + $0x100] sm:$0xff]
    %v298 = vld [vmem:[#allocation8 + $0x108] sm:$0xff]
    %v299 = vld [vmem:[#allocation8 + $0x110] sm:$0xff]
    %v300 = vld [vmem:[#allocation8 + $0x118] sm:$0xff]
    %v301 = vld [vmem:[#allocation8 + $0x120] sm:$0xff]
    %v302 = vld [vmem:[#allocation8 + $0x128] sm:$0xff]
    %v303 = vld [vmem:[#allocation8 + $0x130] sm:$0xff]
    %v304 = vld [vmem:[#allocation8 + $0x138] sm:$0xff]
    %v305 = vld [vmem:[#allocation8 + $0x140] sm:$0xff]
    %v306 = vld [vmem:[#allocation8 + $0x148] sm:$0xff]
    %v307 = vld [vmem:[#allocation8 + $0x150] sm:$0xff]
    %v308 = vld [vmem:[#allocation8 + $0x158] sm:$0xff]
    %v309 = vld [vmem:[#allocation8 + $0x160] sm:$0xff]
    %v310 = vld [vmem:[#allocation8 + $0x168] sm:$0xff]
    %v311 = vld [vmem:[#allocation8 + $0x170] sm:$0xff]
    %v312 = vld [vmem:[#allocation8 + $0x178] sm:$0xff]
    %v313 = vld [vmem:[#allocation8 + $0x180] sm:$0xff]
    %v314 = vld [vmem:[#allocation8 + $0x188] sm:$0xff]
    %v315 = vld [vmem:[#allocation8 + $0x190] sm:$0xff]
    %v316 = vld [vmem:[#allocation8 + $0x198] sm:$0xff]
    %v317 = vld [vmem:[#allocation8 + $0x1a0] sm:$0xff]
    %v318 = vld [vmem:[#allocation8 + $0x1a8] sm:$0xff]
    %v319 = vld [vmem:[#allocation8 + $0x1b0] sm:$0xff]
    %v320 = vld [vmem:[#allocation8 + $0x1b8] sm:$0xff]
    %v321 = vld [vmem:[#allocation8 + $0x1c0] sm:$0xff]
    %v322 = vld [vmem:[#allocation8 + $0x1c8] sm:$0xff]
    %v323 = vld [vmem:[#allocation8 + $0x1d0] sm:$0xff]
    %v324 = vld [vmem:[#allocation8 + $0x1d8] sm:$0xff]
    %v325 = vld [vmem:[#allocation8 + $0x1e0] sm:$0xff]
    %v326 = vld [vmem:[#allocation8 + $0x1e8] sm:$0xff]
    %v327 = vld [vmem:[#allocation8 + $0x1f0] sm:$0xff]
    %v328 = vld [vmem:[#allocation8 + $0x1f8] sm:$0xff]
    %v329 = vld [vmem:[#allocation8 + $0x200] sm:$0xff]
    %v330 = vld [vmem:[#allocation8 + $0x208] sm:$0xff]
    %v331 = vld [vmem:[#allocation8 + $0x210] sm:$0xff]
    %v332 = vld [vmem:[#allocation8 + $0x218] sm:$0xff]
    %v333 = vld [vmem:[#allocation8 + $0x220] sm:$0xff]
    %v334 = vld [vmem:[#allocation8 + $0x228] sm:$0xff]
    %v335 = vld [vmem:[#allocation8 + $0x230] sm:$0xff]
    %v336 = vld [vmem:[#allocation8 + $0x238] sm:$0xff]
    %v337 = vld [vmem:[#allocation8 + $0x240] sm:$0xff]
    %v338 = vld [vmem:[#allocation8 + $0x248] sm:$0xff]
    %v339 = vld [vmem:[#allocation8 + $0x250] sm:$0xff]
    %v340 = vld [vmem:[#allocation8 + $0x258] sm:$0xff]
    %v341 = vld [vmem:[#allocation8 + $0x260] sm:$0xff]
    %v342 = vld [vmem:[#allocation8 + $0x268] sm:$0xff]
    %v343 = vld [vmem:[#allocation8 + $0x270] sm:$0xff]
    %v344 = vld [vmem:[#allocation8 + $0x278] sm:$0xff]
    %v345 = vld [vmem:[#allocation8 + $0x280] sm:$0xff]
    %v346 = vld [vmem:[#allocation8 + $0x288] sm:$0xff]
    %v347 = vld [vmem:[#allocation8 + $0x290] sm:$0xff]
    %v348 = vld [vmem:[#allocation8 + $0x298] sm:$0xff]
    %v349 = vld [vmem:[#allocation8 + $0x2a0] sm:$0xff]
    %v350 = vld [vmem:[#allocation8 + $0x2a8] sm:$0xff]
    %v351 = vld [vmem:[#allocation8 + $0x2b0] sm:$0xff]
    %v352 = vld [vmem:[#allocation8 + $0x2b8] sm:$0xff]
    %v353 = vld [vmem:[#allocation8 + $0x2c0] sm:$0xff]
    %v354 = vld [vmem:[#allocation8 + $0x2c8] sm:$0xff]
    %v355 = vld [vmem:[#allocation8 + $0x2d0] sm:$0xff]
    %v356 = vld [vmem:[#allocation8 + $0x2d8] sm:$0xff]
    %v357 = vld [vmem:[#allocation8 + $0x2e0] sm:$0xff]
    %v358 = vld [vmem:[#allocation8 + $0x2e8] sm:$0xff]
    %v359 = vld [vmem:[#allocation8 + $0x2f0] sm:$0xff]
    %v360 = vld [vmem:[#allocation8 + $0x2f8] sm:$0xff]
    %v361 = vld [vmem:[#allocation8 + $0x300] sm:$0xff]
    %v362 = vld [vmem:[#allocation8 + $0x308] sm:$0xff]
    %v363 = vld [vmem:[#allocation8 + $0x310] sm:$0xff]
    %v364 = vld [vmem:[#allocation8 + $0x318] sm:$0xff]
    %v365 = vld [vmem:[#allocation8 + $0x320] sm:$0xff]
    %v366 = vld [vmem:[#allocation8 + $0x328] sm:$0xff]
    %v367 = vld [vmem:[#allocation8 + $0x330] sm:$0xff]
    %v368 = vld [vmem:[#allocation8 + $0x338] sm:$0xff]
    %v369 = vld [vmem:[#allocation8 + $0x340] sm:$0xff]
    %v370 = vld [vmem:[#allocation8 + $0x348] sm:$0xff]
    %v371 = vld [vmem:[#allocation8 + $0x350] sm:$0xff]
    %v372 = vld [vmem:[#allocation8 + $0x358] sm:$0xff]
    %v373 = vld [vmem:[#allocation8 + $0x360] sm:$0xff]
    %v374 = vld [vmem:[#allocation8 + $0x368] sm:$0xff]
    %v375 = vld [vmem:[#allocation8 + $0x370] sm:$0xff]
    %v376 = vld [vmem:[#allocation8 + $0x378] sm:$0xff]
    %v377 = vld [vmem:[#allocation8 + $0x380] sm:$0xff]
    %v378 = vld [vmem:[#allocation8 + $0x388] sm:$0xff]
    %v379 = vld [vmem:[#allocation8 + $0x390] sm:$0xff]
    %v380 = vld [vmem:[#allocation8 + $0x398] sm:$0xff]
    %v381 = vld [vmem:[#allocation8 + $0x3a0] sm:$0xff]
    %v382 = vld [vmem:[#allocation8 + $0x3a8] sm:$0xff]
    %v383 = vld [vmem:[#allocation8 + $0x3b0] sm:$0xff]
    %v384 = vld [vmem:[#allocation8 + $0x3b8] sm:$0xff]
    %v385 = vld [vmem:[#allocation8 + $0x3c0] sm:$0xff]
    %v386 = vld [vmem:[#allocation8 + $0x3c8] sm:$0xff]
    %v387 = vld [vmem:[#allocation8 + $0x3d0] sm:$0xff]
    %v388 = vld [vmem:[#allocation8 + $0x3d8] sm:$0xff]
    %v389 = vld [vmem:[#allocation8 + $0x3e0] sm:$0xff]
    %v390 = vld [vmem:[#allocation8 + $0x3e8] sm:$0xff]
    %v391 = vld [vmem:[#allocation8 + $0x3f0] sm:$0xff]
    %v392 = vld [vmem:[#allocation8 + $0x3f8] sm:$0xff]
    %v393 = vld [vmem:[#allocation8 + $0x400] sm:$0xff]
    %v394 = vld [vmem:[#allocation8 + $0x408] sm:$0xff]
    %v395 = vld [vmem:[#allocation8 + $0x410] sm:$0xff]
    %v396 = vld [vmem:[#allocation8 + $0x418] sm:$0xff]
    %v397 = vld [vmem:[#allocation8 + $0x420] sm:$0xff]
    %v398 = vld [vmem:[#allocation8 + $0x428] sm:$0xff]
    %v399 = vld [vmem:[#allocation8 + $0x430] sm:$0xff]
    %v400 = vld [vmem:[#allocation8 + $0x438] sm:$0xff]
    %v401 = vld [vmem:[#allocation8 + $0x440] sm:$0xff]
    %v402 = vld [vmem:[#allocation8 + $0x448] sm:$0xff]
    %v403 = vld [vmem:[#allocation8 + $0x450] sm:$0xff]
    %v404 = vld [vmem:[#allocation8 + $0x458] sm:$0xff]
    %v405 = vld [vmem:[#allocation8 + $0x460] sm:$0xff]
    %v406 = vld [vmem:[#allocation8 + $0x468] sm:$0xff]
    %v407 = vld [vmem:[#allocation8 + $0x470] sm:$0xff]
    %v408 = vld [vmem:[#allocation8 + $0x478] sm:$0xff]
    %v409 = vld [vmem:[#allocation8 + $0x480] sm:$0xff]
    %v410 = vld [vmem:[#allocation8 + $0x488] sm:$0xff]
    %v411 = vld [vmem:[#allocation8 + $0x490] sm:$0xff]
    %v412 = vld [vmem:[#allocation8 + $0x498] sm:$0xff]
    %v413 = vld [vmem:[#allocation8 + $0x4a0] sm:$0xff]
    %v414 = vld [vmem:[#allocation8 + $0x4a8] sm:$0xff]
    %v415 = vld [vmem:[#allocation8 + $0x4b0] sm:$0xff]
    %v416 = vld [vmem:[#allocation8 + $0x4b8] sm:$0xff]
    %v417 = vld [vmem:[#allocation8 + $0x4c0] sm:$0xff]
    %v418 = vld [vmem:[#allocation8 + $0x4c8] sm:$0xff]
    %v419 = vld [vmem:[#allocation8 + $0x4d0] sm:$0xff]
    %v420 = vld [vmem:[#allocation8 + $0x4d8] sm:$0xff]
    %v421 = vld [vmem:[#allocation8 + $0x4e0] sm:$0xff]
    %v422 = vld [vmem:[#allocation8 + $0x4e8] sm:$0xff]
    %v423 = vld [vmem:[#allocation8 + $0x4f0] sm:$0xff]
    %v424 = vld [vmem:[#allocation8 + $0x4f8] sm:$0xff]
    %v425 = vld [vmem:[%s4] sm:$0x3]
    %v427 = vperm.slane %v425, 0
    %v428 = vperm.slane %v425, 1
    %431 = vmatpush.msra.mxu0 %v295
    %432 = vmatpush.msra.mxu0 %v293
    %433 = vmatpush.msra.mxu0 %v291
    %434 = vmatpush.msra.mxu0 %v289
    %435 = vmatpush.msra.mxu0 %v287
    %436 = vmatpush.msra.mxu0 %v285
    %437 = vmatpush.msra.mxu0 %v283
    %438 = vmatpush.msra.mxu0 %v281
    %439 = vmatpush.msra.mxu0 %v279
    %440 = vmatpush.msra.mxu0 %v277
    %441 = vmatpush.msra.mxu0 %v275
    %442 = vmatpush.msra.mxu0 %v273
    %443 = vmatpush.msra.mxu0 %v271
    %444 = vmatpush.msra.mxu0 %v269
    %445 = vmatpush.msra.mxu0 %v267
    %446 = vmatpush.msra.mxu0 %v265
    %447 = vmatmul.f32.gmra.mxu0 %v260
    %v448 = vpop.f32.mrf.mxu0
    %v449 = vadd.f32 %v427, %v448
    %450 = vdwg.mxu0
    %451 = vmatpush.msra.mxu0 %v327
    %452 = vmatpush.msra.mxu0 %v325
    %453 = vmatpush.msra.mxu0 %v323
    %454 = vmatpush.msra.mxu0 %v321
    %455 = vmatpush.msra.mxu0 %v319
    %456 = vmatpush.msra.mxu0 %v317
    %457 = vmatpush.msra.mxu0 %v315
    %458 = vmatpush.msra.mxu0 %v313
    %459 = vmatpush.msra.mxu0 %v311
    %460 = vmatpush.msra.mxu0 %v309
    %461 = vmatpush.msra.mxu0 %v307
    %462 = vmatpush.msra.mxu0 %v305
    %463 = vmatpush.msra.mxu0 %v303
    %464 = vmatpush.msra.mxu0 %v301
    %465 = vmatpush.msra.mxu0 %v299
    %466 = vmatpush.msra.mxu0 %v297
    %467 = vmatmul.f32.gmra.mxu0 %v261
    %v468 = vpop.f32.mrf.mxu0
    %v469 = vadd.f32 %v449, %v468
    %470 = vdwg.mxu0
    %471 = vmatpush.msra.mxu0 %v359
    %472 = vmatpush.msra.mxu0 %v357
    %473 = vmatpush.msra.mxu0 %v355
    %474 = vmatpush.msra.mxu0 %v353
    %475 = vmatpush.msra.mxu0 %v351
    %476 = vmatpush.msra.mxu0 %v349
    %477 = vmatpush.msra.mxu0 %v347
    %478 = vmatpush.msra.mxu0 %v345
    %479 = vmatpush.msra.mxu0 %v343
    %480 = vmatpush.msra.mxu0 %v341
    %481 = vmatpush.msra.mxu0 %v339
    %482 = vmatpush.msra.mxu0 %v337
    %483 = vmatpush.msra.mxu0 %v335
    %484 = vmatpush.msra.mxu0 %v333
    %485 = vmatpush.msra.mxu0 %v331
    %486 = vmatpush.msra.mxu0 %v329
    %487 = vmatmul.f32.gmra.mxu0 %v262
    %v488 = vpop.f32.mrf.mxu0
    %v489 = vadd.f32 %v469, %v488
    %490 = vdwg.mxu0
    %491 = vmatpush.msra.mxu0 %v391
    %492 = vmatpush.msra.mxu0 %v389
    %493 = vmatpush.msra.mxu0 %v387
    %494 = vmatpush.msra.mxu0 %v385
    %495 = vmatpush.msra.mxu0 %v383
    %496 = vmatpush.msra.mxu0 %v381
    %497 = vmatpush.msra.mxu0 %v379
    %498 = vmatpush.msra.mxu0 %v377
    %499 = vmatpush.msra.mxu0 %v375
    %500 = vmatpush.msra.mxu0 %v373
    %501 = vmatpush.msra.mxu0 %v371
    %502 = vmatpush.msra.mxu0 %v369
    %503 = vmatpush.msra.mxu0 %v367
    %504 = vmatpush.msra.mxu0 %v365
    %505 = vmatpush.msra.mxu0 %v363
    %506 = vmatpush.msra.mxu0 %v361
    %507 = vmatmul.f32.gmra.mxu0 %v263
    %v508 = vpop.f32.mrf.mxu0
    %v509 = vadd.f32 %v489, %v508
    %510 = vdwg.mxu0
    %511 = vmatpush.msra.mxu0 %v423
    %512 = vmatpush.msra.mxu0 %v421
    %513 = vmatpush.msra.mxu0 %v419
    %514 = vmatpush.msra.mxu0 %v417
    %515 = vmatpush.msra.mxu0 %v415
    %516 = vmatpush.msra.mxu0 %v413
    %517 = vmatpush.msra.mxu0 %v411
    %518 = vmatpush.msra.mxu0 %v409
    %519 = vmatpush.msra.mxu0 %v407
    %520 = vmatpush.msra.mxu0 %v405
    %521 = vmatpush.msra.mxu0 %v403
    %522 = vmatpush.msra.mxu0 %v401
    %523 = vmatpush.msra.mxu0 %v399
    %524 = vmatpush.msra.mxu0 %v397
    %525 = vmatpush.msra.mxu0 %v395
    %526 = vmatpush.msra.mxu0 %v393
    %527 = vmatmul.f32.gmra.mxu0 %v264
    %v528 = vpop.f32.mrf.mxu0
    %v529 = vadd.f32 %v509, %v528
    %530 = vdwg.mxu0
    %531 = vmatpush.msra.mxu0 %v296
    %532 = vmatpush.msra.mxu0 %v294
    %533 = vmatpush.msra.mxu0 %v292
    %534 = vmatpush.msra.mxu0 %v290
    %535 = vmatpush.msra.mxu0 %v288
    %536 = vmatpush.msra.mxu0 %v286
    %537 = vmatpush.msra.mxu0 %v284
    %538 = vmatpush.msra.mxu0 %v282
    %539 = vmatpush.msra.mxu0 %v280
    %540 = vmatpush.msra.mxu0 %v278
    %541 = vmatpush.msra.mxu0 %v276
    %542 = vmatpush.msra.mxu0 %v274
    %543 = vmatpush.msra.mxu0 %v272
    %544 = vmatpush.msra.mxu0 %v270
    %545 = vmatpush.msra.mxu0 %v268
    %546 = vmatpush.msra.mxu0 %v266
    %547 = vmatmul.f32.gmra.mxu0 %v260
    %v548 = vpop.f32.mrf.mxu0
    %v549 = vadd.f32 %v428, %v548
    %550 = vdwg.mxu0
    %551 = vmatpush.msra.mxu0 %v328
    %552 = vmatpush.msra.mxu0 %v326
    %553 = vmatpush.msra.mxu0 %v324
    %554 = vmatpush.msra.mxu0 %v322
    %555 = vmatpush.msra.mxu0 %v320
    %556 = vmatpush.msra.mxu0 %v318
    %557 = vmatpush.msra.mxu0 %v316
    %558 = vmatpush.msra.mxu0 %v314
    %559 = vmatpush.msra.mxu0 %v312
    %560 = vmatpush.msra.mxu0 %v310
    %561 = vmatpush.msra.mxu0 %v308
    %562 = vmatpush.msra.mxu0 %v306
    %563 = vmatpush.msra.mxu0 %v304
    %564 = vmatpush.msra.mxu0 %v302
    %565 = vmatpush.msra.mxu0 %v300
    %566 = vmatpush.msra.mxu0 %v298
    %567 = vmatmul.f32.gmra.mxu0 %v261
    %v568 = vpop.f32.mrf.mxu0
    %v569 = vadd.f32 %v549, %v568
    %570 = vdwg.mxu0
    %571 = vmatpush.msra.mxu0 %v360
    %572 = vmatpush.msra.mxu0 %v358
    %573 = vmatpush.msra.mxu0 %v356
    %574 = vmatpush.msra.mxu0 %v354
    %575 = vmatpush.msra.mxu0 %v352
    %576 = vmatpush.msra.mxu0 %v350
    %577 = vmatpush.msra.mxu0 %v348
    %578 = vmatpush.msra.mxu0 %v346
    %579 = vmatpush.msra.mxu0 %v344
    %580 = vmatpush.msra.mxu0 %v342
    %581 = vmatpush.msra.mxu0 %v340
    %582 = vmatpush.msra.mxu0 %v338
    %583 = vmatpush.msra.mxu0 %v336
    %584 = vmatpush.msra.mxu0 %v334
    %585 = vmatpush.msra.mxu0 %v332
    %586 = vmatpush.msra.mxu0 %v330
    %587 = vmatmul.f32.gmra.mxu0 %v262
    %v588 = vpop.f32.mrf.mxu0
    %v589 = vadd.f32 %v569, %v588
    %590 = vdwg.mxu0
    %591 = vmatpush.msra.mxu0 %v392
    %592 = vmatpush.msra.mxu0 %v390
    %593 = vmatpush.msra.mxu0 %v388
    %594 = vmatpush.msra.mxu0 %v386
    %595 = vmatpush.msra.mxu0 %v384
    %596 = vmatpush.msra.mxu0 %v382
    %597 = vmatpush.msra.mxu0 %v380
    %598 = vmatpush.msra.mxu0 %v378
    %599 = vmatpush.msra.mxu0 %v376
    %600 = vmatpush.msra.mxu0 %v374
    %601 = vmatpush.msra.mxu0 %v372
    %602 = vmatpush.msra.mxu0 %v370
    %603 = vmatpush.msra.mxu0 %v368
    %604 = vmatpush.msra.mxu0 %v366
    %605 = vmatpush.msra.mxu0 %v364
    %606 = vmatpush.msra.mxu0 %v362
    %607 = vmatmul.f32.gmra.mxu0 %v263
    %v608 = vpop.f32.mrf.mxu0
    %v609 = vadd.f32 %v589, %v608
    %610 = vdwg.mxu0
    %611 = vmatpush.msra.mxu0 %v424
    %612 = vmatpush.msra.mxu0 %v422
    %613 = vmatpush.msra.mxu0 %v420
    %614 = vmatpush.msra.mxu0 %v418
    %615 = vmatpush.msra.mxu0 %v416
    %616 = vmatpush.msra.mxu0 %v414
    %617 = vmatpush.msra.mxu0 %v412
    %618 = vmatpush.msra.mxu0 %v410
    %619 = vmatpush.msra.mxu0 %v408
    %620 = vmatpush.msra.mxu0 %v406
    %621 = vmatpush.msra.mxu0 %v404
    %622 = vmatpush.msra.mxu0 %v402
    %623 = vmatpush.msra.mxu0 %v400
    %624 = vmatpush.msra.mxu0 %v398
    %625 = vmatpush.msra.mxu0 %v396
    %626 = vmatpush.msra.mxu0 %v394
    %627 = vmatmul.f32.gmra.mxu0 %v264
    %v628 = vpop.f32.mrf.mxu0
    %v629 = vadd.f32 %v609, %v628
    %630 = vdwg.mxu0
    %v631 = vmax.f32 %v529, 0.0
    %v632 = vmax.f32 %v629, 0.0
    %v633 = vld [vmem:[#allocation10] sm:$0xff]
    %v634 = vld [vmem:[#allocation10 + $0x8] sm:$0xff]
    %v635 = vld [vmem:[#allocation10 + $0x10] sm:$0xff]
    %v636 = vld [vmem:[#allocation10 + $0x18] sm:$0xff]
    %v637 = vld [vmem:[#allocation10 + $0x20] sm:$0xff]
    %v638 = vld [vmem:[#allocation10 + $0x28] sm:$0xff]
    %v639 = vld [vmem:[#allocation10 + $0x30] sm:$0xff]
    %v640 = vld [vmem:[#allocation10 + $0x38] sm:$0xff]
    %v641 = vld [vmem:[#allocation10 + $0x40] sm:$0xff]
    %v642 = vld [vmem:[#allocation10 + $0x48] sm:$0xff]
    %v643 = vld [vmem:[#allocation10 + $0x50] sm:$0xff]
    %v644 = vld [vmem:[#allocation10 + $0x58] sm:$0xff]
    %v645 = vld [vmem:[#allocation10 + $0x60] sm:$0xff]
    %v646 = vld [vmem:[#allocation10 + $0x68] sm:$0xff]
    %v647 = vld [vmem:[#allocation10 + $0x70] sm:$0xff]
    %v648 = vld [vmem:[#allocation10 + $0x78] sm:$0xff]
    %v649 = vld [vmem:[#allocation10 + $0x80] sm:$0xff]
    %v650 = vld [vmem:[#allocation10 + $0x88] sm:$0xff]
    %v651 = vld [vmem:[#allocation10 + $0x90] sm:$0xff]
    %v652 = vld [vmem:[#allocation10 + $0x98] sm:$0xff]
    %v653 = vld [vmem:[#allocation10 + $0xa0] sm:$0xff]
    %v654 = vld [vmem:[#allocation10 + $0xa8] sm:$0xff]
    %v655 = vld [vmem:[#allocation10 + $0xb0] sm:$0xff]
    %v656 = vld [vmem:[#allocation10 + $0xb8] sm:$0xff]
    %v657 = vld [vmem:[#allocation10 + $0xc0] sm:$0xff]
    %v658 = vld [vmem:[#allocation10 + $0xc8] sm:$0xff]
    %v659 = vld [vmem:[#allocation10 + $0xd0] sm:$0xff]
    %v660 = vld [vmem:[#allocation10 + $0xd8] sm:$0xff]
    %v661 = vld [vmem:[#allocation10 + $0xe0] sm:$0xff]
    %v662 = vld [vmem:[#allocation10 + $0xe8] sm:$0xff]
    %v663 = vld [vmem:[#allocation10 + $0xf0] sm:$0xff]
    %v664 = vld [vmem:[#allocation10 + $0xf8] sm:$0xff]
    %v665 = vld [vmem:[%s6] sm:$0x1]
    %v667 = vperm.slane %v665, 0
    %669 = vmatpush.msra.mxu0 %v648
    %670 = vmatpush.msra.mxu0 %v647
    %671 = vmatpush.msra.mxu0 %v646
    %672 = vmatpush.msra.mxu0 %v645
    %673 = vmatpush.msra.mxu0 %v644
    %674 = vmatpush.msra.mxu0 %v643
    %675 = vmatpush.msra.mxu0 %v642
    %676 = vmatpush.msra.mxu0 %v641
    %677 = vmatpush.msra.mxu0 %v640
    %678 = vmatpush.msra.mxu0 %v639
    %679 = vmatpush.msra.mxu0 %v638
    %680 = vmatpush.msra.mxu0 %v637
    %681 = vmatpush.msra.mxu0 %v636
    %682 = vmatpush.msra.mxu0 %v635
    %683 = vmatpush.msra.mxu0 %v634
    %684 = vmatpush.msra.mxu0 %v633
    %685 = vmatmul.f32.gmra.mxu0 %v631
    %v686 = vpop.f32.mrf.mxu0
    %v687 = vadd.f32 %v667, %v686
    %688 = vdwg.mxu0
    %689 = vmatpush.msra.mxu0 %v664
    %690 = vmatpush.msra.mxu0 %v663
    %691 = vmatpush.msra.mxu0 %v662
    %692 = vmatpush.msra.mxu0 %v661
    %693 = vmatpush.msra.mxu0 %v660
    %694 = vmatpush.msra.mxu0 %v659
    %695 = vmatpush.msra.mxu0 %v658
    %696 = vmatpush.msra.mxu0 %v657
    %697 = vmatpush.msra.mxu0 %v656
    %698 = vmatpush.msra.mxu0 %v655
    %699 = vmatpush.msra.mxu0 %v654
    %700 = vmatpush.msra.mxu0 %v653
    %701 = vmatpush.msra.mxu0 %v652
    %702 = vmatpush.msra.mxu0 %v651
    %703 = vmatpush.msra.mxu0 %v650
    %704 = vmatpush.msra.mxu0 %v649
    %705 = vmatmul.f32.gmra.mxu0 %v632
    %v706 = vpop.f32.mrf.mxu0
    %v707 = vadd.f32 %v687, %v706
    %708 = vdwg.mxu0
    %v709 = vmax.f32 %v707, 0.0
    %v710 = vld [vmem:[#allocation11] sm:$0xff]
    %v711 = vld [vmem:[#allocation11 + $0x8] sm:$0xff]
    %v712 = vld [vmem:[#allocation11 + $0x10] sm:$0xff]
    %v713 = vld [vmem:[#allocation11 + $0x18] sm:$0xff]
    %v714 = vld [vmem:[#allocation11 + $0x20] sm:$0xff]
    %v715 = vld [vmem:[#allocation11 + $0x28] sm:$0xff]
    %v716 = vld [vmem:[#allocation11 + $0x30] sm:$0xff]
    %v717 = vld [vmem:[#allocation11 + $0x38] sm:$0xff]
    %v718 = vld [vmem:[#allocation11 + $0x40] sm:$0xff]
    %v719 = vld [vmem:[#allocation11 + $0x48] sm:$0xff]
    %v720 = vld [vmem:[#allocation11 + $0x50] sm:$0xff]
    %v721 = vld [vmem:[#allocation11 + $0x58] sm:$0xff]
    %v722 = vld [vmem:[#allocation11 + $0x60] sm:$0xff]
    %v723 = vld [vmem:[#allocation11 + $0x68] sm:$0xff]
    %v724 = vld [vmem:[#allocation11 + $0x70] sm:$0xff]
    %v725 = vld [vmem:[#allocation11 + $0x78] sm:$0xff]
    %v726 = vld [vmem:[%s8] sm:$0x1]
    %v728 = vperm.slane %v726, 0
    %730 = vmatpush.msra.mxu0 %v725
    %731 = vmatpush.msra.mxu0 %v724
    %732 = vmatpush.msra.mxu0 %v723
    %733 = vmatpush.msra.mxu0 %v722
    %734 = vmatpush.msra.mxu0 %v721
    %735 = vmatpush.msra.mxu0 %v720
    %736 = vmatpush.msra.mxu0 %v719
    %737 = vmatpush.msra.mxu0 %v718
    %738 = vmatpush.msra.mxu0 %v717
    %739 = vmatpush.msra.mxu0 %v716
    %740 = vmatpush.msra.mxu0 %v715
    %741 = vmatpush.msra.mxu0 %v714
    %742 = vmatpush.msra.mxu0 %v713
    %743 = vmatpush.msra.mxu0 %v712
    %744 = vmatpush.msra.mxu0 %v711
    %745 = vmatpush.msra.mxu0 %v710
    %746 = vmatmul.f32.gmra.mxu0 %v709
    %v747 = vpop.f32.mrf.mxu0
    %v748 = vadd.f32 %v728, %v747
    %749 = vdwg.mxu0
    %750 = vst [vmem:[#allocation13] sm:$0xff] %v748
    // Predicated region
    $region62: #{tpu_custom_call.1} parent=1 // pred_check
      _
    $region63: #{tpu_custom_call.1} parent=1 // pred_check_branch
      %752 = sbr.rel (0) target = $region65
    $region64: #{tpu_custom_call.1} parent=1 // pred_region
      %754 = vsyncadd [#allocation4], 0
      %s756 = sshll.u32 [#allocation13], 4
      %s757 = int_to_ptr.vmem [resolvable:$true] %s756
      %s758 = sshll.u32 %s9, 4
      %s759 = int_to_ptr.hbm [resolvable:$true] %s758
      %761 = dma.vmem_to_hbm [thread:$0]  %s757, 128, %s759, [#allocation4]
    $region65: #{tpu_custom_call.1} parent=1 // pred_fallthru
      _
    // Predicated region
    $region66: #{tpu_custom_call.1} parent=1 // pred_check
      _
    $region67: #{tpu_custom_call.1} parent=1 // pred_check_branch
      %763 = sbr.rel (0) target = $region69
    $region68: #{tpu_custom_call.1} parent=1 // pred_region
      %765 = dma.done [#allocation4], 128
    $region69: #{tpu_custom_call.1} parent=1 // pred_fallthru
      _
    %766 = vsyncpa [#allocation3], 1
    %767 = vsyncpa [#allocation6], 1
    %768 = vsyncpa [#allocation9], 1
    %769 = vsyncpa [#allocation12], 1
    %770 = vsyncpa [#allocation4], 1

</llo_original>
